<compile_context>
chip_gen: v6e
topology: v6e:2x2x1
jax: 0.10.0
libtpu: 0.0.40
codegen_flags: <defaults>
</compile_context>

<pallas_src>
import jax
import jax.numpy as jnp
import numpy as np
from jax.experimental import pallas as pl
from jax.experimental.pallas import tpu as pltpu


# ----------------------------------------------------------------------------
# Kernel
# ----------------------------------------------------------------------------
def multitask_kernel(x_ref,
                     w1_ref, b1_ref,      # fc_shared: Linear(D_in, H1) + ReLU
                     wh_ref, bh_ref,      # fused head-first layers: Linear(H1, H_pad) + ReLU
                     wc_ref, bc_ref,      # classifier[2]: Linear(H_pad, C_pad)  (K,N zero-padded)
                     wr_ref, br_ref,      # reconstructor[2]: Linear(H_pad, rec_flat) (K zero-padded)
                     cls_ref, rec_ref):
    cdt = w1_ref.dtype                                   # compute dtype (bf16 or f32)
    x = x_ref[...]

    # shared = ReLU(x @ W1 + b1)        (accumulate f32, bias/ReLU f32)
    shared = jnp.dot(x, w1_ref[...], preferred_element_type=jnp.float32) + b1_ref[...]
    shared = jnp.maximum(shared, 0.0).astype(cdt)

    # fused heads-first-layer: [h_c | h_r | pad] = ReLU(shared @ [Wc1 | Wr1 | 0] + [bc1 | br1 | 0])
    heads = jnp.dot(shared, wh_ref[...], preferred_element_type=jnp.float32) + bh_ref[...]
    heads = jnp.maximum(heads, 0.0).astype(cdt)

    # classifier second layer (N padded to 128 lanes -> unmasked, lane-dense store)
    cls = jnp.dot(heads, wc_ref[...], preferred_element_type=jnp.float32) + bc_ref[...]
    cls_ref[...] = cls.astype(cls_ref.dtype)

    # reconstructor second layer (K padded; zero rows contribute nothing)
    rec = jnp.dot(heads, wr_ref[...], preferred_element_type=jnp.float32) + br_ref[...]
    rec_ref[...] = rec.astype(rec_ref.dtype)


# ----------------------------------------------------------------------------
# Parameter prep (done ONCE, outside pallas_call): fuse + zero-pad + dtype cast
# ----------------------------------------------------------------------------
def _round_up(x, m):
    return (x + m - 1) // m * m


def prepare_params(params, audio_output_dim, num_classes, compute_dtype=jnp.bfloat16):
    (w1, b1, wc1, bc1, wc2, bc2, wr1, br1, wr2, br2) = params
    D_in, H1 = w1.shape
    H2 = wc1.shape[1]
    rec_flat = wr2.shape[1]
    assert rec_flat == int(np.prod(audio_output_dim))

    H_cat = H2 + H1                      # fused head hidden width
    H_pad = _round_up(H_cat, 128)        # lane-pad to full vreg width
    C_pad = _round_up(num_classes, 128)  # lane-dense classifier output

    f32 = jnp.float32
    w_heads = jnp.zeros((H1, H_pad), f32).at[:, :H2].set(wc1).at[:, H2:H_cat].set(wr1)
    b_heads = jnp.zeros((1, H_pad), f32).at[:, :H2].set(bc1).at[:, H2:H_cat].set(br1)

    w_cls = jnp.zeros((H_pad, C_pad), f32).at[:H2, :num_classes].set(wc2)
    b_cls = jnp.zeros((1, C_pad), f32).at[:, :num_classes].set(bc2)

    w_rec = jnp.zeros((H_pad, rec_flat), f32).at[H2:H_cat, :].set(wr2)
    b_rec = br2.astype(f32)

    return {
        "w1": w1.astype(compute_dtype), "b1": b1.astype(f32),
        "w_heads": w_heads.astype(compute_dtype), "b_heads": b_heads,
        "w_cls": w_cls.astype(compute_dtype), "b_cls": b_cls,
        "w_rec": w_rec.astype(compute_dtype), "b_rec": b_rec,
        "dims": {"D_in": D_in, "H1": H1, "H2": H2, "H_pad": H_pad,
                 "C_pad": C_pad, "num_classes": num_classes, "rec_flat": rec_flat},
    }


def _pick_batch_tile(B, cap=256):
    """Whole batch if it fits; otherwise largest multiple-of-8 divisor <= cap."""
    if B <= cap:
        return B
    for t in range(cap, 7, -1):
        if B % t == 0 and t % 8 == 0:
            return t
    return B


# ----------------------------------------------------------------------------
# Wrapper
# ----------------------------------------------------------------------------
def multitask_forward(x, prep, audio_output_dim, *, batch_tile=None,
                      single_buffer_weights=True):
    d = prep["dims"]
    D_in, H1, H_pad = d["D_in"], d["H1"], d["H_pad"]
    C_pad, num_classes, rec_flat = d["C_pad"], d["num_classes"], d["rec_flat"]

    B = x.shape[0]
    cdt = prep["w1"].dtype
    x = x.astype(cdt)

    if batch_tile is None:
        batch_tile = _pick_batch_tile(B)
    assert B % batch_tile == 0 and (batch_tile == B or batch_tile % 8 == 0)
    grid = (B // batch_tile,)

    args = (x,
            prep["w1"], prep["b1"],
            prep["w_heads"], prep["b_heads"],
            prep["w_cls"], prep["b_cls"],
            prep["w_rec"], prep["b_rec"])

    # Advisory cost estimate for XLA scheduling.
    flops = 2 * B * (D_in * H1 + H1 * H_pad + H_pad * C_pad + H_pad * rec_flat)
    in_bytes = sum(int(a.size) * a.dtype.itemsize for a in args)
    out_bytes = B * (C_pad + rec_flat) * 4
    cost = pl.CostEstimate(flops=int(flops), transcendentals=0,
                           bytes_accessed=int(in_bytes + out_bytes))

    # Explicit VMEM budget (weights + per-step tiles, doubled, plus slack).
    weight_bytes = sum(int(a.size) * a.dtype.itemsize for a in args[1:])
    step_bytes = (batch_tile * D_in * x.dtype.itemsize
                  + batch_tile * (C_pad + rec_flat) * 4)
    vmem_limit = int(min(100 << 20, max(16 << 20, 2 * (weight_bytes + step_bytes) + (4 << 20))))

    x_map = lambda i: (i, 0)
    w_map = lambda i: (0, 0)

    def build(use_single_buffer):
        def wspec(shape):
            if use_single_buffer:
                # Constant-index weights: single-buffer to save VMEM (v7x has 64 MiB).
                return pl.BlockSpec(shape, w_map, pipeline_mode=pl.Buffered(1))
            return pl.BlockSpec(shape, w_map)

        in_specs = [
            pl.BlockSpec((batch_tile, D_in), x_map),
            wspec((D_in, H1)), wspec((1, H1)),
            wspec((H1, H_pad)), wspec((1, H_pad)),
            wspec((H_pad, C_pad)), wspec((1, C_pad)),
            wspec((H_pad, rec_flat)), wspec((1, rec_flat)),
        ]
        out_specs = [
            pl.BlockSpec((batch_tile, C_pad), x_map),     # lane-dense padded cls output
            pl.BlockSpec((batch_tile, rec_flat), x_map),
        ]
        return pl.pallas_call(
            multitask_kernel,
            out_shape=(
                jax.ShapeDtypeStruct((B, C_pad), jnp.float32),
                jax.ShapeDtypeStruct((B, rec_flat), jnp.float32),
            ),
            grid_spec=pltpu.PrefetchScalarGridSpec(
                num_scalar_prefetch=0,
                grid=grid,
                in_specs=in_specs,
                out_specs=out_specs,
            ),
            compiler_params=pltpu.CompilerParams(
                dimension_semantics=("parallel",),
                vmem_limit_bytes=vmem_limit),
            cost_estimate=cost,
        )

    if single_buffer_weights:
        try:
            cls_pad, rec_out = build(True)(*args)
        except Exception:
            # Fallback if this JAX build rejects pipeline_mode=Buffered(1).
            cls_pad, rec_out = build(False)(*args)
    else:
        cls_pad, rec_out = build(False)(*args)

    cls_out = cls_pad[:, :num_classes]                    # strip lane padding
    rec_out = rec_out.reshape((B,) + tuple(audio_output_dim))  # nn.Unflatten
    return cls_out, rec_out


# ----------------------------------------------------------------------------
# Synthetic params + pure-JAX reference
# ----------------------------------------------------------------------------
def make_params(key, D_in, H1, H2, num_classes, audio_output_dim):
    """Deterministic synthetic parameters (PyTorch Linear init, transposed)."""
    rec_flat = int(np.prod(audio_output_dim))
    dims = [
        (D_in, H1),         # fc_shared Linear
        (H1, H2),           # classifier Linear 1
        (H2, num_classes),  # classifier Linear 2
        (H1, H1),           # reconstructor Linear 1
        (H1, rec_flat),     # reconstructor Linear 2
    ]
    keys = jax.random.split(key, 2 * len(dims))
    params = []
    for idx, (fin, fout) in enumerate(dims):
        kw, kb = keys[2 * idx], keys[2 * idx + 1]
        scale = 1.0 / np.sqrt(fin)
        w = jax.random.uniform(kw, (fin, fout), jnp.float32, -scale, scale)
        b = jax.random.uniform(kb, (1, fout), jnp.float32, -scale, scale)
        params += [w, b]
    return tuple(params)


def reference_forward(x, params, audio_output_dim):
    (w1, b1, wc1, bc1, wc2, bc2, wr1, br1, wr2, br2) = params
    shared = jax.nn.relu(x @ w1 + b1)
    cls = jax.nn.relu(shared @ wc1 + bc1) @ wc2 + bc2
    rec = jax.nn.relu(shared @ wr1 + br1) @ wr2 + br2
    return cls, rec.reshape((x.shape[0],) + tuple(audio_output_dim))


# ----------------------------------------------------------------------------
# Main
# ----------------------------------------------------------------------------
if __name__ == "__main__":
    # Scaled-down shapes consistent with the module structure:
    #   video_input_dim=32, shared hidden=64, classifier hidden=32,
    #   num_classes=10, audio_output_dim=(8, 128) -> flat 1024.
    B = 16
    D_in = 32
    H1 = 64
    H2 = 32
    num_classes = 10
    audio_output_dim = (8, 128)

    key = jax.random.PRNGKey(0)
    kx, kp = jax.random.split(key)
    x = jax.random.normal(kx, (B, D_in), jnp.float32)
    params = make_params(kp, D_in, H1, H2, num_classes, audio_output_dim)

    cls_ref, rec_ref = reference_forward(x, params, audio_output_dim)

    # 1) f32 compute path: validates the fusion / zero-padding transformations.
    prep_f32 = prepare_params(params, audio_output_dim, num_classes,
                              compute_dtype=jnp.float32)
    cls_f32, rec_f32 = multitask_forward(x, prep_f32, audio_output_dim)
    cls_f32 = jax.block_until_ready(cls_f32)
    rec_f32 = jax.block_until_ready(rec_f32)
    np.testing.assert_allclose(np.asarray(cls_f32), np.asarray(cls_ref),
                               rtol=1e-4, atol=1e-4)
    np.testing.assert_allclose(np.asarray(rec_f32), np.asarray(rec_ref),
                               rtol=1e-4, atol=1e-4)

    # 2) bf16 MXU path (default, for v6e/v7x): f32 accumulation, looser tolerance.
    prep_bf16 = prepare_params(params, audio_output_dim, num_classes,
                               compute_dtype=jnp.bfloat16)
    cls_out, rec_out = multitask_forward(x, prep_bf16, audio_output_dim)
    cls_out = jax.block_until_ready(cls_out)
    rec_out = jax.block_until_ready(rec_out)
    np.testing.assert_allclose(np.asarray(cls_out), np.asarray(cls_ref),
                               rtol=2e-2, atol=2e-2)
    np.testing.assert_allclose(np.asarray(rec_out), np.asarray(rec_ref),
                               rtol=2e-2, atol=2e-2)

    assert cls_out.shape == (B, num_classes)
    assert rec_out.shape == (B,) + audio_output_dim

    print("KERNEL_OK")
</pallas_src>

<mosaic_0001>
module attributes {stable_mosaic.version = 11 : i64} {
  func.func @multitask_kernel(%arg0: i32, %arg1: memref<16x32xf32, #tpu.memory_space<vmem>>, %arg2: memref<32x64xf32, #tpu.memory_space<vmem>>, %arg3: memref<1x64xf32, #tpu.memory_space<vmem>>, %arg4: memref<64x128xf32, #tpu.memory_space<vmem>>, %arg5: memref<1x128xf32, #tpu.memory_space<vmem>>, %arg6: memref<128x128xf32, #tpu.memory_space<vmem>>, %arg7: memref<1x128xf32, #tpu.memory_space<vmem>>, %arg8: memref<128x1024xf32, #tpu.memory_space<vmem>>, %arg9: memref<1x1024xf32, #tpu.memory_space<vmem>>, %arg10: memref<16x128xf32, #tpu.memory_space<vmem>>, %arg11: memref<16x1024xf32, #tpu.memory_space<vmem>>) attributes {dimension_semantics = [#tpu.dimension_semantics<parallel>], iteration_bounds = array<i64: 1>, scalar_prefetch = 0 : i64, scratch_operands = 0 : i64, tpu.core_type = #tpu.core_type<tc>, window_params = [{transform_indices = @transform_0, window_bounds = array<i64: 16, 32>}, {pipeline_mode = #tpu.pipeline_mode<synchronous>, transform_indices = @transform_1, window_bounds = array<i64: 32, 64>}, {pipeline_mode = #tpu.pipeline_mode<synchronous>, transform_indices = @transform_2, window_bounds = array<i64: 1, 64>}, {pipeline_mode = #tpu.pipeline_mode<synchronous>, transform_indices = @transform_3, window_bounds = array<i64: 64, 128>}, {pipeline_mode = #tpu.pipeline_mode<synchronous>, transform_indices = @transform_4, window_bounds = array<i64: 1, 128>}, {pipeline_mode = #tpu.pipeline_mode<synchronous>, transform_indices = @transform_5, window_bounds = array<i64: 128, 128>}, {pipeline_mode = #tpu.pipeline_mode<synchronous>, transform_indices = @transform_6, window_bounds = array<i64: 1, 128>}, {pipeline_mode = #tpu.pipeline_mode<synchronous>, transform_indices = @transform_7, window_bounds = array<i64: 128, 1024>}, {pipeline_mode = #tpu.pipeline_mode<synchronous>, transform_indices = @transform_8, window_bounds = array<i64: 1, 1024>}, {transform_indices = @transform_9, window_bounds = array<i64: 16, 128>}, {transform_indices = @transform_10, window_bounds = array<i64: 16, 1024>}]} {
    %c0 = arith.constant 0 : index
    %c0_0 = arith.constant 0 : index
    %0 = vector.load %arg1[%c0, %c0_0] : memref<16x32xf32, #tpu.memory_space<vmem>>, vector<16x32xf32>
    %c0_1 = arith.constant 0 : index
    %c0_2 = arith.constant 0 : index
    %1 = vector.load %arg2[%c0_1, %c0_2] : memref<32x64xf32, #tpu.memory_space<vmem>>, vector<32x64xf32>
    %cst = arith.constant dense<0.000000e+00> : vector<16x64xf32>
    %2 = tpu.matmul %0, %1, %cst {dimension_numbers = #tpu.dot_dimension_numbers<[1], [0], [0], [1], [0, 0, 1, 1], [], []>} : vector<16x32xf32>, vector<32x64xf32>, vector<16x64xf32> -> vector<16x64xf32>
    %c0_3 = arith.constant 0 : index
    %c0_4 = arith.constant 0 : index
    %3 = vector.load %arg3[%c0_3, %c0_4] : memref<1x64xf32, #tpu.memory_space<vmem>>, vector<1x64xf32>
    %4 = vector.broadcast %3 : vector<1x64xf32> to vector<16x64xf32>
    %5 = arith.addf %2, %4 : vector<16x64xf32>
    %cst_5 = arith.constant 0.000000e+00 : f32
    %6 = vector.broadcast %cst_5 : f32 to vector<16x64xf32>
    %7 = arith.maximumf %5, %6 : vector<16x64xf32>
    %c0_6 = arith.constant 0 : index
    %c0_7 = arith.constant 0 : index
    %8 = vector.load %arg4[%c0_6, %c0_7] : memref<64x128xf32, #tpu.memory_space<vmem>>, vector<64x128xf32>
    %cst_8 = arith.constant dense<0.000000e+00> : vector<16x128xf32>
    %9 = tpu.matmul %7, %8, %cst_8 {dimension_numbers = #tpu.dot_dimension_numbers<[1], [0], [0], [1], [0, 0, 1, 1], [], []>} : vector<16x64xf32>, vector<64x128xf32>, vector<16x128xf32> -> vector<16x128xf32>
    %c0_9 = arith.constant 0 : index
    %c0_10 = arith.constant 0 : index
    %10 = vector.load %arg5[%c0_9, %c0_10] : memref<1x128xf32, #tpu.memory_space<vmem>>, vector<1x128xf32>
    %11 = vector.broadcast %10 : vector<1x128xf32> to vector<16x128xf32>
    %12 = arith.addf %9, %11 : vector<16x128xf32>
    %cst_11 = arith.constant 0.000000e+00 : f32
    %13 = vector.broadcast %cst_11 : f32 to vector<16x128xf32>
    %14 = arith.maximumf %12, %13 : vector<16x128xf32>
    %c0_12 = arith.constant 0 : index
    %c0_13 = arith.constant 0 : index
    %15 = vector.load %arg6[%c0_12, %c0_13] : memref<128x128xf32, #tpu.memory_space<vmem>>, vector<128x128xf32>
    %cst_14 = arith.constant dense<0.000000e+00> : vector<16x128xf32>
    %16 = tpu.matmul %14, %15, %cst_14 {dimension_numbers = #tpu.dot_dimension_numbers<[1], [0], [0], [1], [0, 0, 1, 1], [], []>} : vector<16x128xf32>, vector<128x128xf32>, vector<16x128xf32> -> vector<16x128xf32>
    %c0_15 = arith.constant 0 : index
    %c0_16 = arith.constant 0 : index
    %17 = vector.load %arg7[%c0_15, %c0_16] : memref<1x128xf32, #tpu.memory_space<vmem>>, vector<1x128xf32>
    %18 = vector.broadcast %17 : vector<1x128xf32> to vector<16x128xf32>
    %19 = arith.addf %16, %18 : vector<16x128xf32>
    %c0_17 = arith.constant 0 : index
    %c0_18 = arith.constant 0 : index
    %20 = vector.load %arg10[%c0_17, %c0_18] : memref<16x128xf32, #tpu.memory_space<vmem>>, vector<16x128xf32>
    tpu.vector_store %arg10[%c0_17, %c0_18], %19 {strides = array<i32>} : memref<16x128xf32, #tpu.memory_space<vmem>>, vector<16x128xf32>,
    %c0_19 = arith.constant 0 : index
    %c0_20 = arith.constant 0 : index
    %21 = vector.load %arg8[%c0_19, %c0_20] : memref<128x1024xf32, #tpu.memory_space<vmem>>, vector<128x1024xf32>
    %cst_21 = arith.constant dense<0.000000e+00> : vector<16x1024xf32>
    %22 = tpu.matmul %14, %21, %cst_21 {dimension_numbers = #tpu.dot_dimension_numbers<[1], [0], [0], [1], [0, 0, 1, 1], [], []>} : vector<16x128xf32>, vector<128x1024xf32>, vector<16x1024xf32> -> vector<16x1024xf32>
    %c0_22 = arith.constant 0 : index
    %c0_23 = arith.constant 0 : index
    %23 = vector.load %arg9[%c0_22, %c0_23] : memref<1x1024xf32, #tpu.memory_space<vmem>>, vector<1x1024xf32>
    %24 = vector.broadcast %23 : vector<1x1024xf32> to vector<16x1024xf32>
    %25 = arith.addf %22, %24 : vector<16x1024xf32>
    %c0_24 = arith.constant 0 : index
    %c0_25 = arith.constant 0 : index
    %26 = vector.load %arg11[%c0_24, %c0_25] : memref<16x1024xf32, #tpu.memory_space<vmem>>, vector<16x1024xf32>
    tpu.vector_store %arg11[%c0_24, %c0_25], %25 {strides = array<i32>} : memref<16x1024xf32, #tpu.memory_space<vmem>>, vector<16x1024xf32>,
    return
  }
  func.func @transform_0(%arg0: i32) -> (i32, i32) {
    %c0_i32 = arith.constant 0 : i32
    %c0_i32_0 = arith.constant 0 : i32
    return %arg0, %c0_i32 : i32, i32
  }
  func.func @transform_1(%arg0: i32) -> (i32, i32) {
    %c0_i32 = arith.constant 0 : i32
    %c0_i32_0 = arith.constant 0 : i32
    %c0_i32_1 = arith.constant 0 : i32
    return %c0_i32, %c0_i32_0 : i32, i32
  }
  func.func @transform_2(%arg0: i32) -> (i32, i32) {
    %c0_i32 = arith.constant 0 : i32
    %c0_i32_0 = arith.constant 0 : i32
    %c0_i32_1 = arith.constant 0 : i32
    return %c0_i32, %c0_i32_0 : i32, i32
  }
  func.func @transform_3(%arg0: i32) -> (i32, i32) {
    %c0_i32 = arith.constant 0 : i32
    %c0_i32_0 = arith.constant 0 : i32
    %c0_i32_1 = arith.constant 0 : i32
    return %c0_i32, %c0_i32_0 : i32, i32
  }
  func.func @transform_4(%arg0: i32) -> (i32, i32) {
    %c0_i32 = arith.constant 0 : i32
    %c0_i32_0 = arith.constant 0 : i32
    %c0_i32_1 = arith.constant 0 : i32
    return %c0_i32, %c0_i32_0 : i32, i32
  }
  func.func @transform_5(%arg0: i32) -> (i32, i32) {
    %c0_i32 = arith.constant 0 : i32
    %c0_i32_0 = arith.constant 0 : i32
    %c0_i32_1 = arith.constant 0 : i32
    return %c0_i32, %c0_i32_0 : i32, i32
  }
  func.func @transform_6(%arg0: i32) -> (i32, i32) {
    %c0_i32 = arith.constant 0 : i32
    %c0_i32_0 = arith.constant 0 : i32
    %c0_i32_1 = arith.constant 0 : i32
    return %c0_i32, %c0_i32_0 : i32, i32
  }
  func.func @transform_7(%arg0: i32) -> (i32, i32) {
    %c0_i32 = arith.constant 0 : i32
    %c0_i32_0 = arith.constant 0 : i32
    %c0_i32_1 = arith.constant 0 : i32
    return %c0_i32, %c0_i32_0 : i32, i32
  }
  func.func @transform_8(%arg0: i32) -> (i32, i32) {
    %c0_i32 = arith.constant 0 : i32
    %c0_i32_0 = arith.constant 0 : i32
    %c0_i32_1 = arith.constant 0 : i32
    return %c0_i32, %c0_i32_0 : i32, i32
  }
  func.func @transform_9(%arg0: i32) -> (i32, i32) {
    %c0_i32 = arith.constant 0 : i32
    %c0_i32_0 = arith.constant 0 : i32
    return %arg0, %c0_i32 : i32, i32
  }
  func.func @transform_10(%arg0: i32) -> (i32, i32) {
    %c0_i32 = arith.constant 0 : i32
    %c0_i32_0 = arith.constant 0 : i32
    return %arg0, %c0_i32 : i32, i32
  }
}

module attributes {stable_mosaic.version = 11 : i64} {
  func.func @multitask_kernel(%arg0: i32, %arg1: memref<16x32xf32, #tpu.memory_space<vmem>>, %arg2: memref<32x64xf32, #tpu.memory_space<vmem>>, %arg3: memref<1x64xf32, #tpu.memory_space<vmem>>, %arg4: memref<64x128xf32, #tpu.memory_space<vmem>>, %arg5: memref<1x128xf32, #tpu.memory_space<vmem>>, %arg6: memref<128x128xf32, #tpu.memory_space<vmem>>, %arg7: memref<1x128xf32, #tpu.memory_space<vmem>>, %arg8: memref<128x1024xf32, #tpu.memory_space<vmem>>, %arg9: memref<1x1024xf32, #tpu.memory_space<vmem>>, %arg10: memref<16x128xf32, #tpu.memory_space<vmem>>, %arg11: memref<16x1024xf32, #tpu.memory_space<vmem>>) attributes {dimension_semantics = [#tpu.dimension_semantics<parallel>], iteration_bounds = array<i64: 1>, scalar_prefetch = 0 : i64, scratch_operands = 0 : i64, tpu.core_type = #tpu.core_type<tc>, window_params = [{transform_indices = @transform_0, window_bounds = array<i64: 16, 32>}, {pipeline_mode = #tpu.pipeline_mode<synchronous>, transform_indices = @transform_1, window_bounds = array<i64: 32, 64>}, {pipeline_mode = #tpu.pipeline_mode<synchronous>, transform_indices = @transform_2, window_bounds = array<i64: 1, 64>}, {pipeline_mode = #tpu.pipeline_mode<synchronous>, transform_indices = @transform_3, window_bounds = array<i64: 64, 128>}, {pipeline_mode = #tpu.pipeline_mode<synchronous>, transform_indices = @transform_4, window_bounds = array<i64: 1, 128>}, {pipeline_mode = #tpu.pipeline_mode<synchronous>, transform_indices = @transform_5, window_bounds = array<i64: 128, 128>}, {pipeline_mode = #tpu.pipeline_mode<synchronous>, transform_indices = @transform_6, window_bounds = array<i64: 1, 128>}, {pipeline_mode = #tpu.pipeline_mode<synchronous>, transform_indices = @transform_7, window_bounds = array<i64: 128, 1024>}, {pipeline_mode = #tpu.pipeline_mode<synchronous>, transform_indices = @transform_8, window_bounds = array<i64: 1, 1024>}, {transform_indices = @transform_9, window_bounds = array<i64: 16, 128>}, {transform_indices = @transform_10, window_bounds = array<i64: 16, 1024>}]} {
    %c0 = arith.constant 0 : index
    %c0_0 = arith.constant 0 : index
    %0 = vector.load %arg1[%c0, %c0_0] : memref<16x32xf32, #tpu.memory_space<vmem>>, vector<16x32xf32>
    %c0_1 = arith.constant 0 : index
    %c0_2 = arith.constant 0 : index
    %1 = vector.load %arg2[%c0_1, %c0_2] : memref<32x64xf32, #tpu.memory_space<vmem>>, vector<32x64xf32>
    %cst = arith.constant dense<0.000000e+00> : vector<16x64xf32>
    %2 = tpu.matmul %0, %1, %cst {dimension_numbers = #tpu.dot_dimension_numbers<[1], [0], [0], [1], [0, 0, 1, 1], [], []>} : vector<16x32xf32>, vector<32x64xf32>, vector<16x64xf32> -> vector<16x64xf32>
    %c0_3 = arith.constant 0 : index
    %c0_4 = arith.constant 0 : index
    %3 = vector.load %arg3[%c0_3, %c0_4] : memref<1x64xf32, #tpu.memory_space<vmem>>, vector<1x64xf32>
    %4 = vector.broadcast %3 : vector<1x64xf32> to vector<16x64xf32>
    %5 = arith.addf %2, %4 : vector<16x64xf32>
    %cst_5 = arith.constant 0.000000e+00 : f32
    %6 = vector.broadcast %cst_5 : f32 to vector<16x64xf32>
    %7 = arith.maximumf %5, %6 : vector<16x64xf32>
    %c0_6 = arith.constant 0 : index
    %c0_7 = arith.constant 0 : index
    %8 = vector.load %arg4[%c0_6, %c0_7] : memref<64x128xf32, #tpu.memory_space<vmem>>, vector<64x128xf32>
    %cst_8 = arith.constant dense<0.000000e+00> : vector<16x128xf32>
    %9 = tpu.matmul %7, %8, %cst_8 {dimension_numbers = #tpu.dot_dimension_numbers<[1], [0], [0], [1], [0, 0, 1, 1], [], []>} : vector<16x64xf32>, vector<64x128xf32>, vector<16x128xf32> -> vector<16x128xf32>
    %c0_9 = arith.constant 0 : index
    %c0_10 = arith.constant 0 : index
    %10 = vector.load %arg5[%c0_9, %c0_10] : memref<1x128xf32, #tpu.memory_space<vmem>>, vector<1x128xf32>
    %11 = vector.broadcast %10 : vector<1x128xf32> to vector<16x128xf32>
    %12 = arith.addf %9, %11 : vector<16x128xf32>
    %cst_11 = arith.constant 0.000000e+00 : f32
    %13 = vector.broadcast %cst_11 : f32 to vector<16x128xf32>
    %14 = arith.maximumf %12, %13 : vector<16x128xf32>
    %c0_12 = arith.constant 0 : index
    %c0_13 = arith.constant 0 : index
    %15 = vector.load %arg6[%c0_12, %c0_13] : memref<128x128xf32, #tpu.memory_space<vmem>>, vector<128x128xf32>
    %cst_14 = arith.constant dense<0.000000e+00> : vector<16x128xf32>
    %16 = tpu.matmul %14, %15, %cst_14 {dimension_numbers = #tpu.dot_dimension_numbers<[1], [0], [0], [1], [0, 0, 1, 1], [], []>} : vector<16x128xf32>, vector<128x128xf32>, vector<16x128xf32> -> vector<16x128xf32>
    %c0_15 = arith.constant 0 : index
    %c0_16 = arith.constant 0 : index
    %17 = vector.load %arg7[%c0_15, %c0_16] : memref<1x128xf32, #tpu.memory_space<vmem>>, vector<1x128xf32>
    %18 = vector.broadcast %17 : vector<1x128xf32> to vector<16x128xf32>
    %19 = arith.addf %16, %18 : vector<16x128xf32>
    %c0_17 = arith.constant 0 : index
    %c0_18 = arith.constant 0 : index
    %20 = vector.load %arg10[%c0_17, %c0_18] : memref<16x128xf32, #tpu.memory_space<vmem>>, vector<16x128xf32>
    tpu.vector_store %arg10[%c0_17, %c0_18], %19 {strides = array<i32>} : memref<16x128xf32, #tpu.memory_space<vmem>>, vector<16x128xf32>,
    %c0_19 = arith.constant 0 : index
    %c0_20 = arith.constant 0 : index
    %21 = vector.load %arg8[%c0_19, %c0_20] : memref<128x1024xf32, #tpu.memory_space<vmem>>, vector<128x1024xf32>
    %cst_21 = arith.constant dense<0.000000e+00> : vector<16x1024xf32>
    %22 = tpu.matmul %14, %21, %cst_21 {dimension_numbers = #tpu.dot_dimension_numbers<[1], [0], [0], [1], [0, 0, 1, 1], [], []>} : vector<16x128xf32>, vector<128x1024xf32>, vector<16x1024xf32> -> vector<16x1024xf32>
    %c0_22 = arith.constant 0 : index
    %c0_23 = arith.constant 0 : index
    %23 = vector.load %arg9[%c0_22, %c0_23] : memref<1x1024xf32, #tpu.memory_space<vmem>>, vector<1x1024xf32>
    %24 = vector.broadcast %23 : vector<1x1024xf32> to vector<16x1024xf32>
    %25 = arith.addf %22, %24 : vector<16x1024xf32>
    %c0_24 = arith.constant 0 : index
    %c0_25 = arith.constant 0 : index
    %26 = vector.load %arg11[%c0_24, %c0_25] : memref<16x1024xf32, #tpu.memory_space<vmem>>, vector<16x1024xf32>
    tpu.vector_store %arg11[%c0_24, %c0_25], %25 {strides = array<i32>} : memref<16x1024xf32, #tpu.memory_space<vmem>>, vector<16x1024xf32>,
    return
  }
  func.func @transform_0(%arg0: i32) -> (i32, i32) {
    %c0_i32 = arith.constant 0 : i32
    %c0_i32_0 = arith.constant 0 : i32
    return %arg0, %c0_i32 : i32, i32
  }
  func.func @transform_1(%arg0: i32) -> (i32, i32) {
    %c0_i32 = arith.constant 0 : i32
    %c0_i32_0 = arith.constant 0 : i32
    %c0_i32_1 = arith.constant 0 : i32
    return %c0_i32, %c0_i32_0 : i32, i32
  }
  func.func @transform_2(%arg0: i32) -> (i32, i32) {
    %c0_i32 = arith.constant 0 : i32
    %c0_i32_0 = arith.constant 0 : i32
    %c0_i32_1 = arith.constant 0 : i32
    return %c0_i32, %c0_i32_0 : i32, i32
  }
  func.func @transform_3(%arg0: i32) -> (i32, i32) {
    %c0_i32 = arith.constant 0 : i32
    %c0_i32_0 = arith.constant 0 : i32
    %c0_i32_1 = arith.constant 0 : i32
    return %c0_i32, %c0_i32_0 : i32, i32
  }
  func.func @transform_4(%arg0: i32) -> (i32, i32) {
    %c0_i32 = arith.constant 0 : i32
    %c0_i32_0 = arith.constant 0 : i32
    %c0_i32_1 = arith.constant 0 : i32
    return %c0_i32, %c0_i32_0 : i32, i32
  }
  func.func @transform_5(%arg0: i32) -> (i32, i32) {
    %c0_i32 = arith.constant 0 : i32
    %c0_i32_0 = arith.constant 0 : i32
    %c0_i32_1 = arith.constant 0 : i32
    return %c0_i32, %c0_i32_0 : i32, i32
  }
  func.func @transform_6(%arg0: i32) -> (i32, i32) {
    %c0_i32 = arith.constant 0 : i32
    %c0_i32_0 = arith.constant 0 : i32
    %c0_i32_1 = arith.constant 0 : i32
    return %c0_i32, %c0_i32_0 : i32, i32
  }
  func.func @transform_7(%arg0: i32) -> (i32, i32) {
    %c0_i32 = arith.constant 0 : i32
    %c0_i32_0 = arith.constant 0 : i32
    %c0_i32_1 = arith.constant 0 : i32
    return %c0_i32, %c0_i32_0 : i32, i32
  }
  func.func @transform_8(%arg0: i32) -> (i32, i32) {
    %c0_i32 = arith.constant 0 : i32
    %c0_i32_0 = arith.constant 0 : i32
    %c0_i32_1 = arith.constant 0 : i32
    return %c0_i32, %c0_i32_0 : i32, i32
  }
  func.func @transform_9(%arg0: i32) -> (i32, i32) {
    %c0_i32 = arith.constant 0 : i32
    %c0_i32_0 = arith.constant 0 : i32
    return %arg0, %c0_i32 : i32, i32
  }
  func.func @transform_10(%arg0: i32) -> (i32, i32) {
    %c0_i32 = arith.constant 0 : i32
    %c0_i32_0 = arith.constant 0 : i32
    return %arg0, %c0_i32 : i32, i32
  }
}

</mosaic_0001>

<llo_original>
// kernel: tpu_custom_call.1
$region0: #{tpu_custom_call.1}
  #allocation0 [shape = 'u32[]', space=smem, size = 0x4, offset = 0x4, fixed_abs, tag = 'smem constant byte address 0x4 - core index']
  #allocation1 [shape = 'u32[144,128]{1,0:T(1,128)}', space=vmem, size = 0x12000, scoped, tag = 'internal scratch']
  %s0 = inlined_call_operand.hbm [shape: f32[16,32], index: 0, kind: input, shape index: {}]
  %s1 = inlined_call_operand.hbm [shape: f32[32,64], index: 1, kind: input, shape index: {}]
  %s2 = inlined_call_operand.vmem [shape: f32[1,64], index: 2, kind: input, shape index: {}]
  %s3 = inlined_call_operand.hbm [shape: f32[64,128], index: 3, kind: input, shape index: {}]
  %s4 = inlined_call_operand.vmem [shape: f32[1,128], index: 4, kind: input, shape index: {}]
  %s5 = inlined_call_operand.hbm [shape: f32[128,128], index: 5, kind: input, shape index: {}]
  %s6 = inlined_call_operand.vmem [shape: f32[1,128], index: 6, kind: input, shape index: {}]
  %s7 = inlined_call_operand.hbm [shape: f32[128,1024], index: 7, kind: input, shape index: {}]
  %s8 = inlined_call_operand.vmem [shape: f32[1,1024], index: 8, kind: input, shape index: {}]
  %s9 = inlined_call_operand.hbm [shape: f32[16,128], index: 9, kind: output, shape index: {0}]
  %s10 = inlined_call_operand.hbm [shape: f32[16,1024], index: 10, kind: output, shape index: {1}]
  %11 = xla_tuple %s9, %s10
  %s12 = sld [smem:[#allocation0]]
  $region74: #{tpu_custom_call.1} parent=0
    _
  %s14 = ssub.s32 1, %s12
  %s15 = scalar_select 0, %s14, %s12
  $region1: #{tpu_custom_call.1} parent=0
    #allocation2 [shape = 'u8[8192]{0}', space=vmem, size = 0x2000, scoped, tag = 'input window, operand 0, single buffered']
    #allocation3 [shape = 's32[1]{0}', space=sflag, size = 0x4, scoped, tag = 'scoped memory for tpu_custom_call.1']
    #allocation4 [shape = 's32[1]{0}', space=sflag, size = 0x4, scoped, tag = 'scoped memory for tpu_custom_call.1']
    #allocation5 [shape = 'u8[16384]{0}', space=vmem, size = 0x4000, scoped, tag = 'input window, operand 1, single buffered']
    #allocation6 [shape = 's32[1]{0}', space=sflag, size = 0x4, scoped, tag = 'scoped memory for tpu_custom_call.1']
    #allocation7 [shape = 'u8[32768]{0}', space=vmem, size = 0x8000, scoped, tag = 'input window, operand 3, single buffered']
    #allocation8 [shape = 'u8[65536]{0}', space=vmem, size = 0x10000, scoped, tag = 'input window, operand 5, single buffered']
    #allocation9 [shape = 's32[1]{0}', space=sflag, size = 0x4, scoped, tag = 'scoped memory for tpu_custom_call.1']
    #allocation10 [shape = 'u8[524288]{0}', space=vmem, size = 0x80000, scoped, tag = 'input window, operand 7, single buffered']
    #allocation11 [shape = 'u8[8192]{0}', space=vmem, size = 0x2000, scoped, tag = 'output window, operand 0, single buffered']
    #allocation12 [shape = 'u8[65536]{0}', space=vmem, size = 0x10000, scoped, tag = 'output window, operand 1, single buffered']
    #allocation13 [shape = 's32[1]{0}', space=sflag, size = 0x4, scoped, tag = 'scoped memory for tpu_custom_call.1']
    %16 = vsyncpa [#allocation3], 0
    %17 = vsyncpa [#allocation6], 0
    %18 = vsyncpa [#allocation9], 0
    %19 = vsyncpa [#allocation4], 0
    %20 = vsyncpa [#allocation13], 0
    // Predicated region
    $region2: #{tpu_custom_call.1} parent=1 // pred_check
      _
    $region3: #{tpu_custom_call.1} parent=1 // pred_check_branch
      %22 = sbr.rel (0) target = $region5
    $region4: #{tpu_custom_call.1} parent=1 // pred_region
      %s24 = ssub.s32 256, 256
      %25 = vsyncadd [#allocation3], %s24
      %s26 = sshll.u32 [#allocation2], 4
      %s27 = int_to_ptr.vmem [resolvable:$true] %s26
      %32 = dma.hbm_to_vmem [thread:$0]  %s0, 256, %s27, [#allocation3], 128, 128, 8
    $region5: #{tpu_custom_call.1} parent=1 // pred_fallthru
      _
    // Predicated region
    $region6: #{tpu_custom_call.1} parent=1 // pred_check
      _
    $region7: #{tpu_custom_call.1} parent=1 // pred_check_branch
      %34 = sbr.rel (0) target = $region9
    $region8: #{tpu_custom_call.1} parent=1 // pred_region
      %s36 = ssub.s32 512, 512
      %37 = vsyncadd [#allocation6], %s36
      %s38 = sshll.u32 [#allocation5], 4
      %s39 = int_to_ptr.vmem [resolvable:$true] %s38
      %44 = dma.hbm_to_vmem [thread:$0]  %s1, 512, %s39, [#allocation6], 128, 128, 8
    $region9: #{tpu_custom_call.1} parent=1 // pred_fallthru
      _
    // Predicated region
    $region10: #{tpu_custom_call.1} parent=1 // pred_check
      _
    $region11: #{tpu_custom_call.1} parent=1 // pred_check_branch
      %46 = sbr.rel (0) target = $region13
    $region12: #{tpu_custom_call.1} parent=1 // pred_region
      _
    $region13: #{tpu_custom_call.1} parent=1 // pred_fallthru
      _
    // Predicated region
    $region14: #{tpu_custom_call.1} parent=1 // pred_check
      _
    $region15: #{tpu_custom_call.1} parent=1 // pred_check_branch
      %48 = sbr.rel (0) target = $region17
    $region16: #{tpu_custom_call.1} parent=1 // pred_region
      %s50 = ssub.s32 1024, 1024
      %51 = vsyncadd [#allocation6], %s50
      %s52 = sshll.u32 [#allocation7], 4
      %s53 = int_to_ptr.vmem [resolvable:$true] %s52
      %58 = dma.hbm_to_vmem [thread:$0]  %s3, 1024, %s53, [#allocation6], 128, 128, 8
    $region17: #{tpu_custom_call.1} parent=1 // pred_fallthru
      _
    // Predicated region
    $region18: #{tpu_custom_call.1} parent=1 // pred_check
      _
    $region19: #{tpu_custom_call.1} parent=1 // pred_check_branch
      %60 = sbr.rel (0) target = $region21
    $region20: #{tpu_custom_call.1} parent=1 // pred_region
      _
    $region21: #{tpu_custom_call.1} parent=1 // pred_fallthru
      _
    // Predicated region
    $region22: #{tpu_custom_call.1} parent=1 // pred_check
      _
    $region23: #{tpu_custom_call.1} parent=1 // pred_check_branch
      %62 = sbr.rel (0) target = $region25
    $region24: #{tpu_custom_call.1} parent=1 // pred_region
      %s64 = ssub.s32 2048, 2048
      %65 = vsyncadd [#allocation9], %s64
      %s66 = sshll.u32 [#allocation8], 4
      %s67 = int_to_ptr.vmem [resolvable:$true] %s66
      %72 = dma.hbm_to_vmem [thread:$0]  %s5, 2048, %s67, [#allocation9], 128, 128, 8
    $region25: #{tpu_custom_call.1} parent=1 // pred_fallthru
      _
    // Predicated region
    $region26: #{tpu_custom_call.1} parent=1 // pred_check
      _
    $region27: #{tpu_custom_call.1} parent=1 // pred_check_branch
      %74 = sbr.rel (0) target = $region29
    $region28: #{tpu_custom_call.1} parent=1 // pred_region
      _
    $region29: #{tpu_custom_call.1} parent=1 // pred_fallthru
      _
    // Predicated region
    $region30: #{tpu_custom_call.1} parent=1 // pred_check
      _
    $region31: #{tpu_custom_call.1} parent=1 // pred_check_branch
      %76 = sbr.rel (0) target = $region33
    $region32: #{tpu_custom_call.1} parent=1 // pred_region
      %s78 = ssub.s32 16384, 16384
      %79 = vsyncadd [#allocation9], %s78
      %s80 = sshll.u32 [#allocation10], 4
      %s81 = int_to_ptr.vmem [resolvable:$true] %s80
      %86 = dma.hbm_to_vmem [thread:$0]  %s7, 16384, %s81, [#allocation9], 1024, 1024, 64
    $region33: #{tpu_custom_call.1} parent=1 // pred_fallthru
      _
    // Predicated region
    $region34: #{tpu_custom_call.1} parent=1 // pred_check
      _
    $region35: #{tpu_custom_call.1} parent=1 // pred_check_branch
      %88 = sbr.rel (0) target = $region37
    $region36: #{tpu_custom_call.1} parent=1 // pred_region
      _
    $region37: #{tpu_custom_call.1} parent=1 // pred_fallthru
      _
    // Predicated region
    $region38: #{tpu_custom_call.1} parent=1 // pred_check
      _
    $region39: #{tpu_custom_call.1} parent=1 // pred_check_branch
      %90 = sbr.rel (0) target = $region41
    $region40: #{tpu_custom_call.1} parent=1 // pred_region
      %91 = dma.done [#allocation3], 256
    $region41: #{tpu_custom_call.1} parent=1 // pred_fallthru
      _
    // Predicated region
    $region42: #{tpu_custom_call.1} parent=1 // pred_check
      _
    $region43: #{tpu_custom_call.1} parent=1 // pred_check_branch
      %93 = sbr.rel (0) target = $region45
    $region44: #{tpu_custom_call.1} parent=1 // pred_region
      %94 = dma.done [#allocation6], 512
    $region45: #{tpu_custom_call.1} parent=1 // pred_fallthru
      _
    // Predicated region
    $region46: #{tpu_custom_call.1} parent=1 // pred_check
      _
    $region47: #{tpu_custom_call.1} parent=1 // pred_check_branch
      %96 = sbr.rel (0) target = $region49
    $region48: #{tpu_custom_call.1} parent=1 // pred_region
      %97 = dma.done [#allocation6], 1024
    $region49: #{tpu_custom_call.1} parent=1 // pred_fallthru
      _
    // Predicated region
    $region50: #{tpu_custom_call.1} parent=1 // pred_check
      _
    $region51: #{tpu_custom_call.1} parent=1 // pred_check_branch
      %99 = sbr.rel (0) target = $region53
    $region52: #{tpu_custom_call.1} parent=1 // pred_region
      %100 = dma.done [#allocation9], 2048
    $region53: #{tpu_custom_call.1} parent=1 // pred_fallthru
      _
    // Predicated region
    $region54: #{tpu_custom_call.1} parent=1 // pred_check
      _
    $region55: #{tpu_custom_call.1} parent=1 // pred_check_branch
      %102 = sbr.rel (0) target = $region57
    $region56: #{tpu_custom_call.1} parent=1 // pred_region
      %103 = dma.done [#allocation9], 16384
    $region57: #{tpu_custom_call.1} parent=1 // pred_fallthru
      _
    %v104 = vld [vmem:[#allocation2] sm:$0xff]
    %v105 = vld [vmem:[#allocation2 + $0x8] sm:$0xff]
    %v106 = vld [vmem:[#allocation5] sm:$0xff]
    %v107 = vld [vmem:[#allocation5 + $0x8] sm:$0xff]
    %v108 = vld [vmem:[#allocation5 + $0x10] sm:$0xff]
    %v109 = vld [vmem:[#allocation5 + $0x18] sm:$0xff]
    %v110 = vld [vmem:[%s2] sm:$0x1]
    %v112 = vlaneseq
    %v113 = vshrl.u32 %v112, 7
    %v114 = vsub.s32 0, %v113
    %v115 = vrot.slane %v110, %v114
    %vm117 = vcmask 261120
    %v119 = vsel %vm117, %v104, 0
    %v122 = vsel %vm117, %v105, 0
    %124 = vmatprep.subr.mxu0 0.0
    %125 = vmatpush1.msra.mxu0 0.0
    %126 = vmatprep.subr.mxu0 0.0
    %127 = vmatpush1.msra.mxu0 0.0
    %128 = vmatprep.subr.mxu0 0.0
    %129 = vmatpush1.msra.mxu0 0.0
    %130 = vmatprep.subr.mxu0 0.0
    %131 = vmatpush1.msra.mxu0 0.0
    %132 = vmatprep.subr.mxu0 0.0
    %133 = vmatpush1.msra.mxu0 0.0
    %134 = vmatprep.subr.mxu0 0.0
    %135 = vmatpush1.msra.mxu0 0.0
    %136 = vmatprep.subr.mxu0 0.0
    %137 = vmatpush1.msra.mxu0 0.0
    %138 = vmatprep.subr.mxu0 0.0
    %139 = vmatpush1.msra.mxu0 0.0
    %140 = vmatprep.subr.mxu0 0.0
    %141 = vmatpush1.msra.mxu0 0.0
    %142 = vmatprep.subr.mxu0 0.0
    %143 = vmatpush1.msra.mxu0 0.0
    %144 = vmatprep.subr.mxu0 0.0
    %145 = vmatpush1.msra.mxu0 0.0
    %146 = vmatprep.subr.mxu0 0.0
    %147 = vmatpush1.msra.mxu0 0.0
    %148 = vmatprep.subr.mxu0 0.0
    %149 = vmatpush1.msra.mxu0 %v109
    %150 = vmatprep.subr.mxu0 0.0
    %151 = vmatpush1.msra.mxu0 %v108
    %152 = vmatprep.subr.mxu0 0.0
    %153 = vmatpush1.msra.mxu0 %v107
    %154 = vmatprep.subr.mxu0 0.0
    %155 = vmatpush1.msra.mxu0 %v106
    %156 = vmatprep.subr.mxu0 0.0
    %157 = vmatpush2.msra.mxu0 0.0
    %158 = vmatprep.subr.mxu0 0.0
    %159 = vmatpush2.msra.mxu0 0.0
    %160 = vmatprep.subr.mxu0 0.0
    %161 = vmatpush2.msra.mxu0 0.0
    %162 = vmatprep.subr.mxu0 0.0
    %163 = vmatpush2.msra.mxu0 0.0
    %164 = vmatprep.subr.mxu0 0.0
    %165 = vmatpush2.msra.mxu0 0.0
    %166 = vmatprep.subr.mxu0 0.0
    %167 = vmatpush2.msra.mxu0 0.0
    %168 = vmatprep.subr.mxu0 0.0
    %169 = vmatpush2.msra.mxu0 0.0
    %170 = vmatprep.subr.mxu0 0.0
    %171 = vmatpush2.msra.mxu0 0.0
    %172 = vmatprep.subr.mxu0 0.0
    %173 = vmatpush2.msra.mxu0 0.0
    %174 = vmatprep.subr.mxu0 0.0
    %175 = vmatpush2.msra.mxu0 0.0
    %176 = vmatprep.subr.mxu0 0.0
    %177 = vmatpush2.msra.mxu0 0.0
    %178 = vmatprep.subr.mxu0 0.0
    %179 = vmatpush2.msra.mxu0 0.0
    %180 = vmatprep.subr.mxu0 0.0
    %181 = vmatpush2.msra.mxu0 0.0
    %182 = vmatprep.subr.mxu0 0.0
    %183 = vmatpush2.msra.mxu0 0.0
    %184 = vmatprep.subr.mxu0 0.0
    %185 = vmatpush2.msra.mxu0 0.0
    %186 = vmatprep.subr.mxu0 0.0
    %187 = vmatpush2.msra.mxu0 0.0
    %188 = vmatprep.mubr.f32.mxu0 0.0
    %189 = vmatmul.mubr.f32.gmra.mxu0 %v119
    %v190 = vpop.f32.mrf.mxu0
    %v191 = vadd.f32 %v115, %v190
    %v192 = vpop.f32.mrf.mxu0
    %193 = vmatprep.mubr.f32.mxu0 0.0
    %194 = vmatmul.mubr.f32.gmra.mxu0 %v122
    %v195 = vpop.f32.mrf.mxu0
    %v196 = vadd.f32 %v115, %v195
    %v197 = vpop.f32.mrf.mxu0
    %198 = vdwg.mxu0
    %v199 = vmax.f32 %v191, 0.0
    %v200 = vmax.f32 %v196, 0.0
    %v201 = vld [vmem:[#allocation7] sm:$0xff]
    %v202 = vld [vmem:[#allocation7 + $0x8] sm:$0xff]
    %v203 = vld [vmem:[#allocation7 + $0x10] sm:$0xff]
    %v204 = vld [vmem:[#allocation7 + $0x18] sm:$0xff]
    %v205 = vld [vmem:[#allocation7 + $0x20] sm:$0xff]
    %v206 = vld [vmem:[#allocation7 + $0x28] sm:$0xff]
    %v207 = vld [vmem:[#allocation7 + $0x30] sm:$0xff]
    %v208 = vld [vmem:[#allocation7 + $0x38] sm:$0xff]
    %v209 = vld [vmem:[%s4] sm:$0x1]
    %v211 = vlaneseq
    %v212 = vshrl.u32 %v211, 7
    %v213 = vsub.s32 0, %v212
    %v214 = vrot.slane %v209, %v213
    %vm216 = vcmask 523264
    %v218 = vsel %vm216, %v199, 0
    %v221 = vsel %vm216, %v200, 0
    %223 = vmatprep.subr.mxu0 0.0
    %224 = vmatpush1.msra.mxu0 0.0
    %225 = vmatprep.subr.mxu0 0.0
    %226 = vmatpush1.msra.mxu0 0.0
    %227 = vmatprep.subr.mxu0 0.0
    %228 = vmatpush1.msra.mxu0 0.0
    %229 = vmatprep.subr.mxu0 0.0
    %230 = vmatpush1.msra.mxu0 0.0
    %231 = vmatprep.subr.mxu0 0.0
    %232 = vmatpush1.msra.mxu0 0.0
    %233 = vmatprep.subr.mxu0 0.0
    %234 = vmatpush1.msra.mxu0 0.0
    %235 = vmatprep.subr.mxu0 0.0
    %236 = vmatpush1.msra.mxu0 0.0
    %237 = vmatprep.subr.mxu0 0.0
    %238 = vmatpush1.msra.mxu0 0.0
    %239 = vmatprep.subr.mxu0 0.0
    %240 = vmatpush1.msra.mxu0 %v208
    %241 = vmatprep.subr.mxu0 0.0
    %242 = vmatpush1.msra.mxu0 %v207
    %243 = vmatprep.subr.mxu0 0.0
    %244 = vmatpush1.msra.mxu0 %v206
    %245 = vmatprep.subr.mxu0 0.0
    %246 = vmatpush1.msra.mxu0 %v205
    %247 = vmatprep.subr.mxu0 0.0
    %248 = vmatpush1.msra.mxu0 %v204
    %249 = vmatprep.subr.mxu0 0.0
    %250 = vmatpush1.msra.mxu0 %v203
    %251 = vmatprep.subr.mxu0 0.0
    %252 = vmatpush1.msra.mxu0 %v202
    %253 = vmatprep.subr.mxu0 0.0
    %254 = vmatpush1.msra.mxu0 %v201
    %255 = vmatprep.subr.mxu0 0.0
    %256 = vmatpush2.msra.mxu0 0.0
    %257 = vmatprep.subr.mxu0 0.0
    %258 = vmatpush2.msra.mxu0 0.0
    %259 = vmatprep.subr.mxu0 0.0
    %260 = vmatpush2.msra.mxu0 0.0
    %261 = vmatprep.subr.mxu0 0.0
    %262 = vmatpush2.msra.mxu0 0.0
    %263 = vmatprep.subr.mxu0 0.0
    %264 = vmatpush2.msra.mxu0 0.0
    %265 = vmatprep.subr.mxu0 0.0
    %266 = vmatpush2.msra.mxu0 0.0
    %267 = vmatprep.subr.mxu0 0.0
    %268 = vmatpush2.msra.mxu0 0.0
    %269 = vmatprep.subr.mxu0 0.0
    %270 = vmatpush2.msra.mxu0 0.0
    %271 = vmatprep.subr.mxu0 0.0
    %272 = vmatpush2.msra.mxu0 0.0
    %273 = vmatprep.subr.mxu0 0.0
    %274 = vmatpush2.msra.mxu0 0.0
    %275 = vmatprep.subr.mxu0 0.0
    %276 = vmatpush2.msra.mxu0 0.0
    %277 = vmatprep.subr.mxu0 0.0
    %278 = vmatpush2.msra.mxu0 0.0
    %279 = vmatprep.subr.mxu0 0.0
    %280 = vmatpush2.msra.mxu0 0.0
    %281 = vmatprep.subr.mxu0 0.0
    %282 = vmatpush2.msra.mxu0 0.0
    %283 = vmatprep.subr.mxu0 0.0
    %284 = vmatpush2.msra.mxu0 0.0
    %285 = vmatprep.subr.mxu0 0.0
    %286 = vmatpush2.msra.mxu0 0.0
    %287 = vmatprep.mubr.f32.mxu0 0.0
    %288 = vmatmul.mubr.f32.gmra.mxu0 %v218
    %v289 = vpop.f32.mrf.mxu0
    %v290 = vadd.f32 %v214, %v289
    %v291 = vpop.f32.mrf.mxu0
    %292 = vmatprep.mubr.f32.mxu0 0.0
    %293 = vmatmul.mubr.f32.gmra.mxu0 %v221
    %v294 = vpop.f32.mrf.mxu0
    %v295 = vadd.f32 %v214, %v294
    %v296 = vpop.f32.mrf.mxu0
    %297 = vdwg.mxu0
    %v298 = vmax.f32 %v290, 0.0
    %v299 = vmax.f32 %v295, 0.0
    %v300 = vld [vmem:[#allocation8] sm:$0xff]
    %v301 = vld [vmem:[#allocation8 + $0x8] sm:$0xff]
    %v302 = vld [vmem:[#allocation8 + $0x10] sm:$0xff]
    %v303 = vld [vmem:[#allocation8 + $0x18] sm:$0xff]
    %v304 = vld [vmem:[#allocation8 + $0x20] sm:$0xff]
    %v305 = vld [vmem:[#allocation8 + $0x28] sm:$0xff]
    %v306 = vld [vmem:[#allocation8 + $0x30] sm:$0xff]
    %v307 = vld [vmem:[#allocation8 + $0x38] sm:$0xff]
    %v308 = vld [vmem:[#allocation8 + $0x40] sm:$0xff]
    %v309 = vld [vmem:[#allocation8 + $0x48] sm:$0xff]
    %v310 = vld [vmem:[#allocation8 + $0x50] sm:$0xff]
    %v311 = vld [vmem:[#allocation8 + $0x58] sm:$0xff]
    %v312 = vld [vmem:[#allocation8 + $0x60] sm:$0xff]
    %v313 = vld [vmem:[#allocation8 + $0x68] sm:$0xff]
    %v314 = vld [vmem:[#allocation8 + $0x70] sm:$0xff]
    %v315 = vld [vmem:[#allocation8 + $0x78] sm:$0xff]
    %v316 = vld [vmem:[%s6] sm:$0x1]
    %v318 = vlaneseq
    %v319 = vshrl.u32 %v318, 7
    %v320 = vsub.s32 0, %v319
    %v321 = vrot.slane %v316, %v320
    %323 = vmatprep.subr.mxu0 0.0
    %324 = vmatpush1.msra.mxu0 %v315
    %325 = vmatprep.subr.mxu0 0.0
    %326 = vmatpush1.msra.mxu0 %v314
    %327 = vmatprep.subr.mxu0 0.0
    %328 = vmatpush1.msra.mxu0 %v313
    %329 = vmatprep.subr.mxu0 0.0
    %330 = vmatpush1.msra.mxu0 %v312
    %331 = vmatprep.subr.mxu0 0.0
    %332 = vmatpush1.msra.mxu0 %v311
    %333 = vmatprep.subr.mxu0 0.0
    %334 = vmatpush1.msra.mxu0 %v310
    %335 = vmatprep.subr.mxu0 0.0
    %336 = vmatpush1.msra.mxu0 %v309
    %337 = vmatprep.subr.mxu0 0.0
    %338 = vmatpush1.msra.mxu0 %v308
    %339 = vmatprep.subr.mxu0 0.0
    %340 = vmatpush1.msra.mxu0 %v307
    %341 = vmatprep.subr.mxu0 0.0
    %342 = vmatpush1.msra.mxu0 %v306
    %343 = vmatprep.subr.mxu0 0.0
    %344 = vmatpush1.msra.mxu0 %v305
    %345 = vmatprep.subr.mxu0 0.0
    %346 = vmatpush1.msra.mxu0 %v304
    %347 = vmatprep.subr.mxu0 0.0
    %348 = vmatpush1.msra.mxu0 %v303
    %349 = vmatprep.subr.mxu0 0.0
    %350 = vmatpush1.msra.mxu0 %v302
    %351 = vmatprep.subr.mxu0 0.0
    %352 = vmatpush1.msra.mxu0 %v301
    %353 = vmatprep.subr.mxu0 0.0
    %354 = vmatpush1.msra.mxu0 %v300
    %355 = vmatprep.subr.mxu0 0.0
    %356 = vmatpush2.msra.mxu0 0.0
    %357 = vmatprep.subr.mxu0 0.0
    %358 = vmatpush2.msra.mxu0 0.0
    %359 = vmatprep.subr.mxu0 0.0
    %360 = vmatpush2.msra.mxu0 0.0
    %361 = vmatprep.subr.mxu0 0.0
    %362 = vmatpush2.msra.mxu0 0.0
    %363 = vmatprep.subr.mxu0 0.0
    %364 = vmatpush2.msra.mxu0 0.0
    %365 = vmatprep.subr.mxu0 0.0
    %366 = vmatpush2.msra.mxu0 0.0
    %367 = vmatprep.subr.mxu0 0.0
    %368 = vmatpush2.msra.mxu0 0.0
    %369 = vmatprep.subr.mxu0 0.0
    %370 = vmatpush2.msra.mxu0 0.0
    %371 = vmatprep.subr.mxu0 0.0
    %372 = vmatpush2.msra.mxu0 0.0
    %373 = vmatprep.subr.mxu0 0.0
    %374 = vmatpush2.msra.mxu0 0.0
    %375 = vmatprep.subr.mxu0 0.0
    %376 = vmatpush2.msra.mxu0 0.0
    %377 = vmatprep.subr.mxu0 0.0
    %378 = vmatpush2.msra.mxu0 0.0
    %379 = vmatprep.subr.mxu0 0.0
    %380 = vmatpush2.msra.mxu0 0.0
    %381 = vmatprep.subr.mxu0 0.0
    %382 = vmatpush2.msra.mxu0 0.0
    %383 = vmatprep.subr.mxu0 0.0
    %384 = vmatpush2.msra.mxu0 0.0
    %385 = vmatprep.subr.mxu0 0.0
    %386 = vmatpush2.msra.mxu0 0.0
    %387 = vmatprep.mubr.f32.mxu0 0.0
    %388 = vmatmul.mubr.f32.gmra.mxu0 %v298
    %v389 = vpop.f32.mrf.mxu0
    %v390 = vadd.f32 %v321, %v389
    %v391 = vpop.f32.mrf.mxu0
    %392 = vmatprep.mubr.f32.mxu0 0.0
    %393 = vmatmul.mubr.f32.gmra.mxu0 %v299
    %v394 = vpop.f32.mrf.mxu0
    %v395 = vadd.f32 %v321, %v394
    %v396 = vpop.f32.mrf.mxu0
    %397 = vdwg.mxu0
    %398 = vst [vmem:[#allocation11] sm:$0xff] %v390
    %399 = vst [vmem:[#allocation11 + $0x8] sm:$0xff] %v395
    %v400 = vld [vmem:[#allocation10] sm:$0xff]
    %v401 = vld [vmem:[#allocation10 + $0x8] sm:$0xff]
    %v402 = vld [vmem:[#allocation10 + $0x10] sm:$0xff]
    %v403 = vld [vmem:[#allocation10 + $0x18] sm:$0xff]
    %v404 = vld [vmem:[#allocation10 + $0x20] sm:$0xff]
    %v405 = vld [vmem:[#allocation10 + $0x28] sm:$0xff]
    %v406 = vld [vmem:[#allocation10 + $0x30] sm:$0xff]
    %v407 = vld [vmem:[#allocation10 + $0x38] sm:$0xff]
    %v408 = vld [vmem:[#allocation10 + $0x40] sm:$0xff]
    %v409 = vld [vmem:[#allocation10 + $0x48] sm:$0xff]
    %v410 = vld [vmem:[#allocation10 + $0x50] sm:$0xff]
    %v411 = vld [vmem:[#allocation10 + $0x58] sm:$0xff]
    %v412 = vld [vmem:[#allocation10 + $0x60] sm:$0xff]
    %v413 = vld [vmem:[#allocation10 + $0x68] sm:$0xff]
    %v414 = vld [vmem:[#allocation10 + $0x70] sm:$0xff]
    %v415 = vld [vmem:[#allocation10 + $0x78] sm:$0xff]
    %v416 = vld [vmem:[#allocation10 + $0x80] sm:$0xff]
    %v417 = vld [vmem:[#allocation10 + $0x88] sm:$0xff]
    %v418 = vld [vmem:[#allocation10 + $0x90] sm:$0xff]
    %v419 = vld [vmem:[#allocation10 + $0x98] sm:$0xff]
    %v420 = vld [vmem:[#allocation10 + $0xa0] sm:$0xff]
    %v421 = vld [vmem:[#allocation10 + $0xa8] sm:$0xff]
    %v422 = vld [vmem:[#allocation10 + $0xb0] sm:$0xff]
    %v423 = vld [vmem:[#allocation10 + $0xb8] sm:$0xff]
    %v424 = vld [vmem:[#allocation10 + $0xc0] sm:$0xff]
    %v425 = vld [vmem:[#allocation10 + $0xc8] sm:$0xff]
    %v426 = vld [vmem:[#allocation10 + $0xd0] sm:$0xff]
    %v427 = vld [vmem:[#allocation10 + $0xd8] sm:$0xff]
    %v428 = vld [vmem:[#allocation10 + $0xe0] sm:$0xff]
    %v429 = vld [vmem:[#allocation10 + $0xe8] sm:$0xff]
    %v430 = vld [vmem:[#allocation10 + $0xf0] sm:$0xff]
    %v431 = vld [vmem:[#allocation10 + $0xf8] sm:$0xff]
    %v432 = vld [vmem:[#allocation10 + $0x100] sm:$0xff]
    %v433 = vld [vmem:[#allocation10 + $0x108] sm:$0xff]
    %v434 = vld [vmem:[#allocation10 + $0x110] sm:$0xff]
    %v435 = vld [vmem:[#allocation10 + $0x118] sm:$0xff]
    %v436 = vld [vmem:[#allocation10 + $0x120] sm:$0xff]
    %v437 = vld [vmem:[#allocation10 + $0x128] sm:$0xff]
    %v438 = vld [vmem:[#allocation10 + $0x130] sm:$0xff]
    %v439 = vld [vmem:[#allocation10 + $0x138] sm:$0xff]
    %v440 = vld [vmem:[#allocation10 + $0x140] sm:$0xff]
    %v441 = vld [vmem:[#allocation10 + $0x148] sm:$0xff]
    %v442 = vld [vmem:[#allocation10 + $0x150] sm:$0xff]
    %v443 = vld [vmem:[#allocation10 + $0x158] sm:$0xff]
    %v444 = vld [vmem:[#allocation10 + $0x160] sm:$0xff]
    %v445 = vld [vmem:[#allocation10 + $0x168] sm:$0xff]
    %v446 = vld [vmem:[#allocation10 + $0x170] sm:$0xff]
    %v447 = vld [vmem:[#allocation10 + $0x178] sm:$0xff]
    %v448 = vld [vmem:[#allocation10 + $0x180] sm:$0xff]
    %v449 = vld [vmem:[#allocation10 + $0x188] sm:$0xff]
    %v450 = vld [vmem:[#allocation10 + $0x190] sm:$0xff]
    %v451 = vld [vmem:[#allocation10 + $0x198] sm:$0xff]
    %v452 = vld [vmem:[#allocation10 + $0x1a0] sm:$0xff]
    %v453 = vld [vmem:[#allocation10 + $0x1a8] sm:$0xff]
    %v454 = vld [vmem:[#allocation10 + $0x1b0] sm:$0xff]
    %v455 = vld [vmem:[#allocation10 + $0x1b8] sm:$0xff]
    %v456 = vld [vmem:[#allocation10 + $0x1c0] sm:$0xff]
    %v457 = vld [vmem:[#allocation10 + $0x1c8] sm:$0xff]
    %v458 = vld [vmem:[#allocation10 + $0x1d0] sm:$0xff]
    %v459 = vld [vmem:[#allocation10 + $0x1d8] sm:$0xff]
    %v460 = vld [vmem:[#allocation10 + $0x1e0] sm:$0xff]
    %v461 = vld [vmem:[#allocation10 + $0x1e8] sm:$0xff]
    %v462 = vld [vmem:[#allocation10 + $0x1f0] sm:$0xff]
    %v463 = vld [vmem:[#allocation10 + $0x1f8] sm:$0xff]
    %v464 = vld [vmem:[#allocation10 + $0x200] sm:$0xff]
    %v465 = vld [vmem:[#allocation10 + $0x208] sm:$0xff]
    %v466 = vld [vmem:[#allocation10 + $0x210] sm:$0xff]
    %v467 = vld [vmem:[#allocation10 + $0x218] sm:$0xff]
    %v468 = vld [vmem:[#allocation10 + $0x220] sm:$0xff]
    %v469 = vld [vmem:[#allocation10 + $0x228] sm:$0xff]
    %v470 = vld [vmem:[#allocation10 + $0x230] sm:$0xff]
    %v471 = vld [vmem:[#allocation10 + $0x238] sm:$0xff]
    %v472 = vld [vmem:[#allocation10 + $0x240] sm:$0xff]
    %v473 = vld [vmem:[#allocation10 + $0x248] sm:$0xff]
    %v474 = vld [vmem:[#allocation10 + $0x250] sm:$0xff]
    %v475 = vld [vmem:[#allocation10 + $0x258] sm:$0xff]
    %v476 = vld [vmem:[#allocation10 + $0x260] sm:$0xff]
    %v477 = vld [vmem:[#allocation10 + $0x268] sm:$0xff]
    %v478 = vld [vmem:[#allocation10 + $0x270] sm:$0xff]
    %v479 = vld [vmem:[#allocation10 + $0x278] sm:$0xff]
    %v480 = vld [vmem:[#allocation10 + $0x280] sm:$0xff]
    %v481 = vld [vmem:[#allocation10 + $0x288] sm:$0xff]
    %v482 = vld [vmem:[#allocation10 + $0x290] sm:$0xff]
    %v483 = vld [vmem:[#allocation10 + $0x298] sm:$0xff]
    %v484 = vld [vmem:[#allocation10 + $0x2a0] sm:$0xff]
    %v485 = vld [vmem:[#allocation10 + $0x2a8] sm:$0xff]
    %v486 = vld [vmem:[#allocation10 + $0x2b0] sm:$0xff]
    %v487 = vld [vmem:[#allocation10 + $0x2b8] sm:$0xff]
    %v488 = vld [vmem:[#allocation10 + $0x2c0] sm:$0xff]
    %v489 = vld [vmem:[#allocation10 + $0x2c8] sm:$0xff]
    %v490 = vld [vmem:[#allocation10 + $0x2d0] sm:$0xff]
    %v491 = vld [vmem:[#allocation10 + $0x2d8] sm:$0xff]
    %v492 = vld [vmem:[#allocation10 + $0x2e0] sm:$0xff]
    %v493 = vld [vmem:[#allocation10 + $0x2e8] sm:$0xff]
    %v494 = vld [vmem:[#allocation10 + $0x2f0] sm:$0xff]
    %v495 = vld [vmem:[#allocation10 + $0x2f8] sm:$0xff]
    %v496 = vld [vmem:[#allocation10 + $0x300] sm:$0xff]
    %v497 = vld [vmem:[#allocation10 + $0x308] sm:$0xff]
    %v498 = vld [vmem:[#allocation10 + $0x310] sm:$0xff]
    %v499 = vld [vmem:[#allocation10 + $0x318] sm:$0xff]
    %v500 = vld [vmem:[#allocation10 + $0x320] sm:$0xff]
    %v501 = vld [vmem:[#allocation10 + $0x328] sm:$0xff]
    %v502 = vld [vmem:[#allocation10 + $0x330] sm:$0xff]
    %v503 = vld [vmem:[#allocation10 + $0x338] sm:$0xff]
    %v504 = vld [vmem:[#allocation10 + $0x340] sm:$0xff]
    %v505 = vld [vmem:[#allocation10 + $0x348] sm:$0xff]
    %v506 = vld [vmem:[#allocation10 + $0x350] sm:$0xff]
    %v507 = vld [vmem:[#allocation10 + $0x358] sm:$0xff]
    %v508 = vld [vmem:[#allocation10 + $0x360] sm:$0xff]
    %v509 = vld [vmem:[#allocation10 + $0x368] sm:$0xff]
    %v510 = vld [vmem:[#allocation10 + $0x370] sm:$0xff]
    %v511 = vld [vmem:[#allocation10 + $0x378] sm:$0xff]
    %v512 = vld [vmem:[#allocation10 + $0x380] sm:$0xff]
    %v513 = vld [vmem:[#allocation10 + $0x388] sm:$0xff]
    %v514 = vld [vmem:[#allocation10 + $0x390] sm:$0xff]
    %v515 = vld [vmem:[#allocation10 + $0x398] sm:$0xff]
    %v516 = vld [vmem:[#allocation10 + $0x3a0] sm:$0xff]
    %v517 = vld [vmem:[#allocation10 + $0x3a8] sm:$0xff]
    %v518 = vld [vmem:[#allocation10 + $0x3b0] sm:$0xff]
    %v519 = vld [vmem:[#allocation10 + $0x3b8] sm:$0xff]
    %v520 = vld [vmem:[#allocation10 + $0x3c0] sm:$0xff]
    %v521 = vld [vmem:[#allocation10 + $0x3c8] sm:$0xff]
    %v522 = vld [vmem:[#allocation10 + $0x3d0] sm:$0xff]
    %v523 = vld [vmem:[#allocation10 + $0x3d8] sm:$0xff]
    %v524 = vld [vmem:[#allocation10 + $0x3e0] sm:$0xff]
    %v525 = vld [vmem:[#allocation10 + $0x3e8] sm:$0xff]
    %v526 = vld [vmem:[#allocation10 + $0x3f0] sm:$0xff]
    %v527 = vld [vmem:[#allocation10 + $0x3f8] sm:$0xff]
    %v528 = vld [vmem:[%s8] sm:$0xff]
    %v530 = vlaneseq
    %v531 = vshrl.u32 %v530, 7
    %v532 = vsub.s32 0, %v531
    %v533 = vrot.slane %v528, %v532
    %v534 = vlaneseq
    %v535 = vshrl.u32 %v534, 7
    %v536 = vsub.s32 1, %v535
    %v537 = vrot.slane %v528, %v536
    %v538 = vlaneseq
    %v539 = vshrl.u32 %v538, 7
    %v540 = vsub.s32 2, %v539
    %v541 = vrot.slane %v528, %v540
    %v542 = vlaneseq
    %v543 = vshrl.u32 %v542, 7
    %v544 = vsub.s32 3, %v543
    %v545 = vrot.slane %v528, %v544
    %v546 = vlaneseq
    %v547 = vshrl.u32 %v546, 7
    %v548 = vsub.s32 4, %v547
    %v549 = vrot.slane %v528, %v548
    %v550 = vlaneseq
    %v551 = vshrl.u32 %v550, 7
    %v552 = vsub.s32 5, %v551
    %v553 = vrot.slane %v528, %v552
    %v554 = vlaneseq
    %v555 = vshrl.u32 %v554, 7
    %v556 = vsub.s32 6, %v555
    %v557 = vrot.slane %v528, %v556
    %v558 = vlaneseq
    %v559 = vshrl.u32 %v558, 7
    %v560 = vsub.s32 7, %v559
    %v561 = vrot.slane %v528, %v560
    %570 = vmatprep.subr.mxu0 %v521
    %571 = vmatpush1.msra.mxu0 %v520
    %572 = vmatprep.subr.mxu0 %v513
    %573 = vmatpush1.msra.mxu0 %v512
    %574 = vmatprep.subr.mxu0 %v505
    %575 = vmatpush1.msra.mxu0 %v504
    %576 = vmatprep.subr.mxu0 %v497
    %577 = vmatpush1.msra.mxu0 %v496
    %578 = vmatprep.subr.mxu0 %v489
    %579 = vmatpush1.msra.mxu0 %v488
    %580 = vmatprep.subr.mxu0 %v481
    %581 = vmatpush1.msra.mxu0 %v480
    %582 = vmatprep.subr.mxu0 %v473
    %583 = vmatpush1.msra.mxu0 %v472
    %584 = vmatprep.subr.mxu0 %v465
    %585 = vmatpush1.msra.mxu0 %v464
    %586 = vmatprep.subr.mxu0 %v457
    %587 = vmatpush1.msra.mxu0 %v456
    %588 = vmatprep.subr.mxu0 %v449
    %589 = vmatpush1.msra.mxu0 %v448
    %590 = vmatprep.subr.mxu0 %v441
    %591 = vmatpush1.msra.mxu0 %v440
    %592 = vmatprep.subr.mxu0 %v433
    %593 = vmatpush1.msra.mxu0 %v432
    %594 = vmatprep.subr.mxu0 %v425
    %595 = vmatpush1.msra.mxu0 %v424
    %596 = vmatprep.subr.mxu0 %v417
    %597 = vmatpush1.msra.mxu0 %v416
    %598 = vmatprep.subr.mxu0 %v409
    %599 = vmatpush1.msra.mxu0 %v408
    %600 = vmatprep.subr.mxu0 %v401
    %601 = vmatpush1.msra.mxu0 %v400
    %602 = vmatprep.subr.mxu0 0.0
    %603 = vmatpush2.msra.mxu0 0.0
    %604 = vmatprep.subr.mxu0 0.0
    %605 = vmatpush2.msra.mxu0 0.0
    %606 = vmatprep.subr.mxu0 0.0
    %607 = vmatpush2.msra.mxu0 0.0
    %608 = vmatprep.subr.mxu0 0.0
    %609 = vmatpush2.msra.mxu0 0.0
    %610 = vmatprep.subr.mxu0 0.0
    %611 = vmatpush2.msra.mxu0 0.0
    %612 = vmatprep.subr.mxu0 0.0
    %613 = vmatpush2.msra.mxu0 0.0
    %614 = vmatprep.subr.mxu0 0.0
    %615 = vmatpush2.msra.mxu0 0.0
    %616 = vmatprep.subr.mxu0 0.0
    %617 = vmatpush2.msra.mxu0 0.0
    %618 = vmatprep.subr.mxu0 0.0
    %619 = vmatpush2.msra.mxu0 0.0
    %620 = vmatprep.subr.mxu0 0.0
    %621 = vmatpush2.msra.mxu0 0.0
    %622 = vmatprep.subr.mxu0 0.0
    %623 = vmatpush2.msra.mxu0 0.0
    %624 = vmatprep.subr.mxu0 0.0
    %625 = vmatpush2.msra.mxu0 0.0
    %626 = vmatprep.subr.mxu0 0.0
    %627 = vmatpush2.msra.mxu0 0.0
    %628 = vmatprep.subr.mxu0 0.0
    %629 = vmatpush2.msra.mxu0 0.0
    %630 = vmatprep.subr.mxu0 0.0
    %631 = vmatpush2.msra.mxu0 0.0
    %632 = vmatprep.subr.mxu0 0.0
    %633 = vmatpush2.msra.mxu0 0.0
    %634 = vmatprep.mubr.f32.mxu0 0.0
    %635 = vmatmul.mubr.f32.gmra.mxu0 %v298
    %v636 = vpop.f32.mrf.mxu0
    %v637 = vadd.f32 %v533, %v636
    %v638 = vpop.f32.mrf.mxu0
    %v639 = vadd.f32 %v537, %v638
    %640 = vmatprep.mubr.f32.mxu0 0.0
    %641 = vmatmul.mubr.f32.gmra.mxu0 %v299
    %v642 = vpop.f32.mrf.mxu0
    %v643 = vadd.f32 %v533, %v642
    %v644 = vpop.f32.mrf.mxu0
    %v645 = vadd.f32 %v537, %v644
    %646 = vdwg.mxu0
    %647 = vmatprep.subr.mxu0 %v523
    %648 = vmatpush1.msra.mxu0 %v522
    %649 = vmatprep.subr.mxu0 %v515
    %650 = vmatpush1.msra.mxu0 %v514
    %651 = vmatprep.subr.mxu0 %v507
    %652 = vmatpush1.msra.mxu0 %v506
    %653 = vmatprep.subr.mxu0 %v499
    %654 = vmatpush1.msra.mxu0 %v498
    %655 = vmatprep.subr.mxu0 %v491
    %656 = vmatpush1.msra.mxu0 %v490
    %657 = vmatprep.subr.mxu0 %v483
    %658 = vmatpush1.msra.mxu0 %v482
    %659 = vmatprep.subr.mxu0 %v475
    %660 = vmatpush1.msra.mxu0 %v474
    %661 = vmatprep.subr.mxu0 %v467
    %662 = vmatpush1.msra.mxu0 %v466
    %663 = vmatprep.subr.mxu0 %v459
    %664 = vmatpush1.msra.mxu0 %v458
    %665 = vmatprep.subr.mxu0 %v451
    %666 = vmatpush1.msra.mxu0 %v450
    %667 = vmatprep.subr.mxu0 %v443
    %668 = vmatpush1.msra.mxu0 %v442
    %669 = vmatprep.subr.mxu0 %v435
    %670 = vmatpush1.msra.mxu0 %v434
    %671 = vmatprep.subr.mxu0 %v427
    %672 = vmatpush1.msra.mxu0 %v426
    %673 = vmatprep.subr.mxu0 %v419
    %674 = vmatpush1.msra.mxu0 %v418
    %675 = vmatprep.subr.mxu0 %v411
    %676 = vmatpush1.msra.mxu0 %v410
    %677 = vmatprep.subr.mxu0 %v403
    %678 = vmatpush1.msra.mxu0 %v402
    %679 = vmatprep.subr.mxu0 0.0
    %680 = vmatpush2.msra.mxu0 0.0
    %681 = vmatprep.subr.mxu0 0.0
    %682 = vmatpush2.msra.mxu0 0.0
    %683 = vmatprep.subr.mxu0 0.0
    %684 = vmatpush2.msra.mxu0 0.0
    %685 = vmatprep.subr.mxu0 0.0
    %686 = vmatpush2.msra.mxu0 0.0
    %687 = vmatprep.subr.mxu0 0.0
    %688 = vmatpush2.msra.mxu0 0.0
    %689 = vmatprep.subr.mxu0 0.0
    %690 = vmatpush2.msra.mxu0 0.0
    %691 = vmatprep.subr.mxu0 0.0
    %692 = vmatpush2.msra.mxu0 0.0
    %693 = vmatprep.subr.mxu0 0.0
    %694 = vmatpush2.msra.mxu0 0.0
    %695 = vmatprep.subr.mxu0 0.0
    %696 = vmatpush2.msra.mxu0 0.0
    %697 = vmatprep.subr.mxu0 0.0
    %698 = vmatpush2.msra.mxu0 0.0
    %699 = vmatprep.subr.mxu0 0.0
    %700 = vmatpush2.msra.mxu0 0.0
    %701 = vmatprep.subr.mxu0 0.0
    %702 = vmatpush2.msra.mxu0 0.0
    %703 = vmatprep.subr.mxu0 0.0
    %704 = vmatpush2.msra.mxu0 0.0
    %705 = vmatprep.subr.mxu0 0.0
    %706 = vmatpush2.msra.mxu0 0.0
    %707 = vmatprep.subr.mxu0 0.0
    %708 = vmatpush2.msra.mxu0 0.0
    %709 = vmatprep.subr.mxu0 0.0
    %710 = vmatpush2.msra.mxu0 0.0
    %711 = vmatprep.mubr.f32.mxu0 0.0
    %712 = vmatmul.mubr.f32.gmra.mxu0 %v298
    %v713 = vpop.f32.mrf.mxu0
    %v714 = vadd.f32 %v541, %v713
    %v715 = vpop.f32.mrf.mxu0
    %v716 = vadd.f32 %v545, %v715
    %717 = vmatprep.mubr.f32.mxu0 0.0
    %718 = vmatmul.mubr.f32.gmra.mxu0 %v299
    %v719 = vpop.f32.mrf.mxu0
    %v720 = vadd.f32 %v541, %v719
    %v721 = vpop.f32.mrf.mxu0
    %v722 = vadd.f32 %v545, %v721
    %723 = vdwg.mxu0
    %724 = vmatprep.subr.mxu0 %v525
    %725 = vmatpush1.msra.mxu0 %v524
    %726 = vmatprep.subr.mxu0 %v517
    %727 = vmatpush1.msra.mxu0 %v516
    %728 = vmatprep.subr.mxu0 %v509
    %729 = vmatpush1.msra.mxu0 %v508
    %730 = vmatprep.subr.mxu0 %v501
    %731 = vmatpush1.msra.mxu0 %v500
    %732 = vmatprep.subr.mxu0 %v493
    %733 = vmatpush1.msra.mxu0 %v492
    %734 = vmatprep.subr.mxu0 %v485
    %735 = vmatpush1.msra.mxu0 %v484
    %736 = vmatprep.subr.mxu0 %v477
    %737 = vmatpush1.msra.mxu0 %v476
    %738 = vmatprep.subr.mxu0 %v469
    %739 = vmatpush1.msra.mxu0 %v468
    %740 = vmatprep.subr.mxu0 %v461
    %741 = vmatpush1.msra.mxu0 %v460
    %742 = vmatprep.subr.mxu0 %v453
    %743 = vmatpush1.msra.mxu0 %v452
    %744 = vmatprep.subr.mxu0 %v445
    %745 = vmatpush1.msra.mxu0 %v444
    %746 = vmatprep.subr.mxu0 %v437
    %747 = vmatpush1.msra.mxu0 %v436
    %748 = vmatprep.subr.mxu0 %v429
    %749 = vmatpush1.msra.mxu0 %v428
    %750 = vmatprep.subr.mxu0 %v421
    %751 = vmatpush1.msra.mxu0 %v420
    %752 = vmatprep.subr.mxu0 %v413
    %753 = vmatpush1.msra.mxu0 %v412
    %754 = vmatprep.subr.mxu0 %v405
    %755 = vmatpush1.msra.mxu0 %v404
    %756 = vmatprep.subr.mxu0 0.0
    %757 = vmatpush2.msra.mxu0 0.0
    %758 = vmatprep.subr.mxu0 0.0
    %759 = vmatpush2.msra.mxu0 0.0
    %760 = vmatprep.subr.mxu0 0.0
    %761 = vmatpush2.msra.mxu0 0.0
    %762 = vmatprep.subr.mxu0 0.0
    %763 = vmatpush2.msra.mxu0 0.0
    %764 = vmatprep.subr.mxu0 0.0
    %765 = vmatpush2.msra.mxu0 0.0
    %766 = vmatprep.subr.mxu0 0.0
    %767 = vmatpush2.msra.mxu0 0.0
    %768 = vmatprep.subr.mxu0 0.0
    %769 = vmatpush2.msra.mxu0 0.0
    %770 = vmatprep.subr.mxu0 0.0
    %771 = vmatpush2.msra.mxu0 0.0
    %772 = vmatprep.subr.mxu0 0.0
    %773 = vmatpush2.msra.mxu0 0.0
    %774 = vmatprep.subr.mxu0 0.0
    %775 = vmatpush2.msra.mxu0 0.0
    %776 = vmatprep.subr.mxu0 0.0
    %777 = vmatpush2.msra.mxu0 0.0
    %778 = vmatprep.subr.mxu0 0.0
    %779 = vmatpush2.msra.mxu0 0.0
    %780 = vmatprep.subr.mxu0 0.0
    %781 = vmatpush2.msra.mxu0 0.0
    %782 = vmatprep.subr.mxu0 0.0
    %783 = vmatpush2.msra.mxu0 0.0
    %784 = vmatprep.subr.mxu0 0.0
    %785 = vmatpush2.msra.mxu0 0.0
    %786 = vmatprep.subr.mxu0 0.0
    %787 = vmatpush2.msra.mxu0 0.0
    %788 = vmatprep.mubr.f32.mxu0 0.0
    %789 = vmatmul.mubr.f32.gmra.mxu0 %v298
    %v790 = vpop.f32.mrf.mxu0
    %v791 = vadd.f32 %v549, %v790
    %v792 = vpop.f32.mrf.mxu0
    %v793 = vadd.f32 %v553, %v792
    %794 = vmatprep.mubr.f32.mxu0 0.0
    %795 = vmatmul.mubr.f32.gmra.mxu0 %v299
    %v796 = vpop.f32.mrf.mxu0
    %v797 = vadd.f32 %v549, %v796
    %v798 = vpop.f32.mrf.mxu0
    %v799 = vadd.f32 %v553, %v798
    %800 = vdwg.mxu0
    %801 = vmatprep.subr.mxu0 %v527
    %802 = vmatpush1.msra.mxu0 %v526
    %803 = vmatprep.subr.mxu0 %v519
    %804 = vmatpush1.msra.mxu0 %v518
    %805 = vmatprep.subr.mxu0 %v511
    %806 = vmatpush1.msra.mxu0 %v510
    %807 = vmatprep.subr.mxu0 %v503
    %808 = vmatpush1.msra.mxu0 %v502
    %809 = vmatprep.subr.mxu0 %v495
    %810 = vmatpush1.msra.mxu0 %v494
    %811 = vmatprep.subr.mxu0 %v487
    %812 = vmatpush1.msra.mxu0 %v486
    %813 = vmatprep.subr.mxu0 %v479
    %814 = vmatpush1.msra.mxu0 %v478
    %815 = vmatprep.subr.mxu0 %v471
    %816 = vmatpush1.msra.mxu0 %v470
    %817 = vmatprep.subr.mxu0 %v463
    %818 = vmatpush1.msra.mxu0 %v462
    %819 = vmatprep.subr.mxu0 %v455
    %820 = vmatpush1.msra.mxu0 %v454
    %821 = vmatprep.subr.mxu0 %v447
    %822 = vmatpush1.msra.mxu0 %v446
    %823 = vmatprep.subr.mxu0 %v439
    %824 = vmatpush1.msra.mxu0 %v438
    %825 = vmatprep.subr.mxu0 %v431
    %826 = vmatpush1.msra.mxu0 %v430
    %827 = vmatprep.subr.mxu0 %v423
    %828 = vmatpush1.msra.mxu0 %v422
    %829 = vmatprep.subr.mxu0 %v415
    %830 = vmatpush1.msra.mxu0 %v414
    %831 = vmatprep.subr.mxu0 %v407
    %832 = vmatpush1.msra.mxu0 %v406
    %833 = vmatprep.subr.mxu0 0.0
    %834 = vmatpush2.msra.mxu0 0.0
    %835 = vmatprep.subr.mxu0 0.0
    %836 = vmatpush2.msra.mxu0 0.0
    %837 = vmatprep.subr.mxu0 0.0
    %838 = vmatpush2.msra.mxu0 0.0
    %839 = vmatprep.subr.mxu0 0.0
    %840 = vmatpush2.msra.mxu0 0.0
    %841 = vmatprep.subr.mxu0 0.0
    %842 = vmatpush2.msra.mxu0 0.0
    %843 = vmatprep.subr.mxu0 0.0
    %844 = vmatpush2.msra.mxu0 0.0
    %845 = vmatprep.subr.mxu0 0.0
    %846 = vmatpush2.msra.mxu0 0.0
    %847 = vmatprep.subr.mxu0 0.0
    %848 = vmatpush2.msra.mxu0 0.0
    %849 = vmatprep.subr.mxu0 0.0
    %850 = vmatpush2.msra.mxu0 0.0
    %851 = vmatprep.subr.mxu0 0.0
    %852 = vmatpush2.msra.mxu0 0.0
    %853 = vmatprep.subr.mxu0 0.0
    %854 = vmatpush2.msra.mxu0 0.0
    %855 = vmatprep.subr.mxu0 0.0
    %856 = vmatpush2.msra.mxu0 0.0
    %857 = vmatprep.subr.mxu0 0.0
    %858 = vmatpush2.msra.mxu0 0.0
    %859 = vmatprep.subr.mxu0 0.0
    %860 = vmatpush2.msra.mxu0 0.0
    %861 = vmatprep.subr.mxu0 0.0
    %862 = vmatpush2.msra.mxu0 0.0
    %863 = vmatprep.subr.mxu0 0.0
    %864 = vmatpush2.msra.mxu0 0.0
    %865 = vmatprep.mubr.f32.mxu0 0.0
    %866 = vmatmul.mubr.f32.gmra.mxu0 %v298
    %v867 = vpop.f32.mrf.mxu0
    %v868 = vadd.f32 %v557, %v867
    %v869 = vpop.f32.mrf.mxu0
    %v870 = vadd.f32 %v561, %v869
    %871 = vmatprep.mubr.f32.mxu0 0.0
    %872 = vmatmul.mubr.f32.gmra.mxu0 %v299
    %v873 = vpop.f32.mrf.mxu0
    %v874 = vadd.f32 %v557, %v873
    %v875 = vpop.f32.mrf.mxu0
    %v876 = vadd.f32 %v561, %v875
    %877 = vdwg.mxu0
    %878 = vst [vmem:[#allocation12] sm:$0xff] %v637
    %879 = vst [vmem:[#allocation12 + $0x8] sm:$0xff] %v639
    %880 = vst [vmem:[#allocation12 + $0x10] sm:$0xff] %v714
    %881 = vst [vmem:[#allocation12 + $0x18] sm:$0xff] %v716
    %882 = vst [vmem:[#allocation12 + $0x20] sm:$0xff] %v791
    %883 = vst [vmem:[#allocation12 + $0x28] sm:$0xff] %v793
    %884 = vst [vmem:[#allocation12 + $0x30] sm:$0xff] %v868
    %885 = vst [vmem:[#allocation12 + $0x38] sm:$0xff] %v870
    %886 = vst [vmem:[#allocation12 + $0x40] sm:$0xff] %v643
    %887 = vst [vmem:[#allocation12 + $0x48] sm:$0xff] %v645
    %888 = vst [vmem:[#allocation12 + $0x50] sm:$0xff] %v720
    %889 = vst [vmem:[#allocation12 + $0x58] sm:$0xff] %v722
    %890 = vst [vmem:[#allocation12 + $0x60] sm:$0xff] %v797
    %891 = vst [vmem:[#allocation12 + $0x68] sm:$0xff] %v799
    %892 = vst [vmem:[#allocation12 + $0x70] sm:$0xff] %v874
    %893 = vst [vmem:[#allocation12 + $0x78] sm:$0xff] %v876
    // Predicated region
    $region58: #{tpu_custom_call.1} parent=1 // pred_check
      _
    $region59: #{tpu_custom_call.1} parent=1 // pred_check_branch
      %895 = sbr.rel (0) target = $region61
    $region60: #{tpu_custom_call.1} parent=1 // pred_region
      %s897 = ssub.s32 256, 256
      %898 = vsyncadd [#allocation4], %s897
      %s899 = sshll.u32 [#allocation11], 4
      %s900 = int_to_ptr.vmem [resolvable:$true] %s899
      %905 = dma.vmem_to_hbm [thread:$0]  %s900, 256, %s9, [#allocation4], 128, 128, 8
    $region61: #{tpu_custom_call.1} parent=1 // pred_fallthru
      _
    // Predicated region
    $region62: #{tpu_custom_call.1} parent=1 // pred_check
      _
    $region63: #{tpu_custom_call.1} parent=1 // pred_check_branch
      %907 = sbr.rel (0) target = $region65
    $region64: #{tpu_custom_call.1} parent=1 // pred_region
      %s909 = ssub.s32 2048, 2048
      %910 = vsyncadd [#allocation13], %s909
      %s911 = sshll.u32 [#allocation12], 4
      %s912 = int_to_ptr.vmem [resolvable:$true] %s911
      %917 = dma.vmem_to_hbm [thread:$0]  %s912, 2048, %s10, [#allocation13], 1024, 1024, 64
    $region65: #{tpu_custom_call.1} parent=1 // pred_fallthru
      _
    // Predicated region
    $region66: #{tpu_custom_call.1} parent=1 // pred_check
      _
    $region67: #{tpu_custom_call.1} parent=1 // pred_check_branch
      %919 = sbr.rel (0) target = $region69
    $region68: #{tpu_custom_call.1} parent=1 // pred_region
      %920 = dma.done [#allocation4], 256
    $region69: #{tpu_custom_call.1} parent=1 // pred_fallthru
      _
    // Predicated region
    $region70: #{tpu_custom_call.1} parent=1 // pred_check
      _
    $region71: #{tpu_custom_call.1} parent=1 // pred_check_branch
      %922 = sbr.rel (0) target = $region73
    $region72: #{tpu_custom_call.1} parent=1 // pred_region
      %923 = dma.done [#allocation13], 2048
    $region73: #{tpu_custom_call.1} parent=1 // pred_fallthru
      _
    %924 = vsyncpa [#allocation3], 1
    %925 = vsyncpa [#allocation6], 1
    %926 = vsyncpa [#allocation9], 1
    %927 = vsyncpa [#allocation4], 1
    %928 = vsyncpa [#allocation13], 1

// kernel: tpu_custom_call.1
$region0: #{tpu_custom_call.1}
  #allocation0 [shape = 'u32[]', space=smem, size = 0x4, offset = 0x4, fixed_abs, tag = 'smem constant byte address 0x4 - core index']
  #allocation1 [shape = 'u32[144,128]{1,0:T(1,128)}', space=vmem, size = 0x12000, scoped, tag = 'internal scratch']
  %s0 = inlined_call_operand.hbm [shape: f32[16,32], index: 0, kind: input, shape index: {}]
  %s1 = inlined_call_operand.hbm [shape: f32[32,64], index: 1, kind: input, shape index: {}]
  %s2 = inlined_call_operand.vmem [shape: f32[1,64], index: 2, kind: input, shape index: {}]
  %s3 = inlined_call_operand.hbm [shape: f32[64,128], index: 3, kind: input, shape index: {}]
  %s4 = inlined_call_operand.vmem [shape: f32[1,128], index: 4, kind: input, shape index: {}]
  %s5 = inlined_call_operand.hbm [shape: f32[128,128], index: 5, kind: input, shape index: {}]
  %s6 = inlined_call_operand.vmem [shape: f32[1,128], index: 6, kind: input, shape index: {}]
  %s7 = inlined_call_operand.hbm [shape: f32[128,1024], index: 7, kind: input, shape index: {}]
  %s8 = inlined_call_operand.vmem [shape: f32[1,1024], index: 8, kind: input, shape index: {}]
  %s9 = inlined_call_operand.hbm [shape: f32[16,128], index: 9, kind: output, shape index: {0}]
  %s10 = inlined_call_operand.hbm [shape: f32[16,1024], index: 10, kind: output, shape index: {1}]
  %11 = xla_tuple %s9, %s10
  %s12 = sld [smem:[#allocation0]]
  $region74: #{tpu_custom_call.1} parent=0
    _
  %s14 = ssub.s32 1, %s12
  %s15 = scalar_select 0, %s14, %s12
  $region1: #{tpu_custom_call.1} parent=0
    #allocation2 [shape = 'u8[8192]{0}', space=vmem, size = 0x2000, scoped, tag = 'input window, operand 0, single buffered']
    #allocation3 [shape = 's32[1]{0}', space=sflag, size = 0x4, scoped, tag = 'scoped memory for tpu_custom_call.1']
    #allocation4 [shape = 's32[1]{0}', space=sflag, size = 0x4, scoped, tag = 'scoped memory for tpu_custom_call.1']
    #allocation5 [shape = 'u8[16384]{0}', space=vmem, size = 0x4000, scoped, tag = 'input window, operand 1, single buffered']
    #allocation6 [shape = 's32[1]{0}', space=sflag, size = 0x4, scoped, tag = 'scoped memory for tpu_custom_call.1']
    #allocation7 [shape = 'u8[32768]{0}', space=vmem, size = 0x8000, scoped, tag = 'input window, operand 3, single buffered']
    #allocation8 [shape = 'u8[65536]{0}', space=vmem, size = 0x10000, scoped, tag = 'input window, operand 5, single buffered']
    #allocation9 [shape = 's32[1]{0}', space=sflag, size = 0x4, scoped, tag = 'scoped memory for tpu_custom_call.1']
    #allocation10 [shape = 'u8[524288]{0}', space=vmem, size = 0x80000, scoped, tag = 'input window, operand 7, single buffered']
    #allocation11 [shape = 'u8[8192]{0}', space=vmem, size = 0x2000, scoped, tag = 'output window, operand 0, single buffered']
    #allocation12 [shape = 'u8[65536]{0}', space=vmem, size = 0x10000, scoped, tag = 'output window, operand 1, single buffered']
    #allocation13 [shape = 's32[1]{0}', space=sflag, size = 0x4, scoped, tag = 'scoped memory for tpu_custom_call.1']
    %16 = vsyncpa [#allocation3], 0
    %17 = vsyncpa [#allocation6], 0
    %18 = vsyncpa [#allocation9], 0
    %19 = vsyncpa [#allocation4], 0
    %20 = vsyncpa [#allocation13], 0
    // Predicated region
    $region2: #{tpu_custom_call.1} parent=1 // pred_check
      _
    $region3: #{tpu_custom_call.1} parent=1 // pred_check_branch
      %22 = sbr.rel (0) target = $region5
    $region4: #{tpu_custom_call.1} parent=1 // pred_region
      %s24 = ssub.s32 256, 256
      %25 = vsyncadd [#allocation3], %s24
      %s26 = sshll.u32 [#allocation2], 4
      %s27 = int_to_ptr.vmem [resolvable:$true] %s26
      %32 = dma.hbm_to_vmem [thread:$0]  %s0, 256, %s27, [#allocation3], 128, 128, 8
    $region5: #{tpu_custom_call.1} parent=1 // pred_fallthru
      _
    // Predicated region
    $region6: #{tpu_custom_call.1} parent=1 // pred_check
      _
    $region7: #{tpu_custom_call.1} parent=1 // pred_check_branch
      %34 = sbr.rel (0) target = $region9
    $region8: #{tpu_custom_call.1} parent=1 // pred_region
      %s36 = ssub.s32 512, 512
      %37 = vsyncadd [#allocation6], %s36
      %s38 = sshll.u32 [#allocation5], 4
      %s39 = int_to_ptr.vmem [resolvable:$true] %s38
      %44 = dma.hbm_to_vmem [thread:$0]  %s1, 512, %s39, [#allocation6], 128, 128, 8
    $region9: #{tpu_custom_call.1} parent=1 // pred_fallthru
      _
    // Predicated region
    $region10: #{tpu_custom_call.1} parent=1 // pred_check
      _
    $region11: #{tpu_custom_call.1} parent=1 // pred_check_branch
      %46 = sbr.rel (0) target = $region13
    $region12: #{tpu_custom_call.1} parent=1 // pred_region
      _
    $region13: #{tpu_custom_call.1} parent=1 // pred_fallthru
      _
    // Predicated region
    $region14: #{tpu_custom_call.1} parent=1 // pred_check
      _
    $region15: #{tpu_custom_call.1} parent=1 // pred_check_branch
      %48 = sbr.rel (0) target = $region17
    $region16: #{tpu_custom_call.1} parent=1 // pred_region
      %s50 = ssub.s32 1024, 1024
      %51 = vsyncadd [#allocation6], %s50
      %s52 = sshll.u32 [#allocation7], 4
      %s53 = int_to_ptr.vmem [resolvable:$true] %s52
      %58 = dma.hbm_to_vmem [thread:$0]  %s3, 1024, %s53, [#allocation6], 128, 128, 8
    $region17: #{tpu_custom_call.1} parent=1 // pred_fallthru
      _
    // Predicated region
    $region18: #{tpu_custom_call.1} parent=1 // pred_check
      _
    $region19: #{tpu_custom_call.1} parent=1 // pred_check_branch
      %60 = sbr.rel (0) target = $region21
    $region20: #{tpu_custom_call.1} parent=1 // pred_region
      _
    $region21: #{tpu_custom_call.1} parent=1 // pred_fallthru
      _
    // Predicated region
    $region22: #{tpu_custom_call.1} parent=1 // pred_check
      _
    $region23: #{tpu_custom_call.1} parent=1 // pred_check_branch
      %62 = sbr.rel (0) target = $region25
    $region24: #{tpu_custom_call.1} parent=1 // pred_region
      %s64 = ssub.s32 2048, 2048
      %65 = vsyncadd [#allocation9], %s64
      %s66 = sshll.u32 [#allocation8], 4
      %s67 = int_to_ptr.vmem [resolvable:$true] %s66
      %72 = dma.hbm_to_vmem [thread:$0]  %s5, 2048, %s67, [#allocation9], 128, 128, 8
    $region25: #{tpu_custom_call.1} parent=1 // pred_fallthru
      _
    // Predicated region
    $region26: #{tpu_custom_call.1} parent=1 // pred_check
      _
    $region27: #{tpu_custom_call.1} parent=1 // pred_check_branch
      %74 = sbr.rel (0) target = $region29
    $region28: #{tpu_custom_call.1} parent=1 // pred_region
      _
    $region29: #{tpu_custom_call.1} parent=1 // pred_fallthru
      _
    // Predicated region
    $region30: #{tpu_custom_call.1} parent=1 // pred_check
      _
    $region31: #{tpu_custom_call.1} parent=1 // pred_check_branch
      %76 = sbr.rel (0) target = $region33
    $region32: #{tpu_custom_call.1} parent=1 // pred_region
      %s78 = ssub.s32 16384, 16384
      %79 = vsyncadd [#allocation9], %s78
      %s80 = sshll.u32 [#allocation10], 4
      %s81 = int_to_ptr.vmem [resolvable:$true] %s80
      %86 = dma.hbm_to_vmem [thread:$0]  %s7, 16384, %s81, [#allocation9], 1024, 1024, 64
    $region33: #{tpu_custom_call.1} parent=1 // pred_fallthru
      _
    // Predicated region
    $region34: #{tpu_custom_call.1} parent=1 // pred_check
      _
    $region35: #{tpu_custom_call.1} parent=1 // pred_check_branch
      %88 = sbr.rel (0) target = $region37
    $region36: #{tpu_custom_call.1} parent=1 // pred_region
      _
    $region37: #{tpu_custom_call.1} parent=1 // pred_fallthru
      _
    // Predicated region
    $region38: #{tpu_custom_call.1} parent=1 // pred_check
      _
    $region39: #{tpu_custom_call.1} parent=1 // pred_check_branch
      %90 = sbr.rel (0) target = $region41
    $region40: #{tpu_custom_call.1} parent=1 // pred_region
      %91 = dma.done [#allocation3], 256
    $region41: #{tpu_custom_call.1} parent=1 // pred_fallthru
      _
    // Predicated region
    $region42: #{tpu_custom_call.1} parent=1 // pred_check
      _
    $region43: #{tpu_custom_call.1} parent=1 // pred_check_branch
      %93 = sbr.rel (0) target = $region45
    $region44: #{tpu_custom_call.1} parent=1 // pred_region
      %94 = dma.done [#allocation6], 512
    $region45: #{tpu_custom_call.1} parent=1 // pred_fallthru
      _
    // Predicated region
    $region46: #{tpu_custom_call.1} parent=1 // pred_check
      _
    $region47: #{tpu_custom_call.1} parent=1 // pred_check_branch
      %96 = sbr.rel (0) target = $region49
    $region48: #{tpu_custom_call.1} parent=1 // pred_region
      %97 = dma.done [#allocation6], 1024
    $region49: #{tpu_custom_call.1} parent=1 // pred_fallthru
      _
    // Predicated region
    $region50: #{tpu_custom_call.1} parent=1 // pred_check
      _
    $region51: #{tpu_custom_call.1} parent=1 // pred_check_branch
      %99 = sbr.rel (0) target = $region53
    $region52: #{tpu_custom_call.1} parent=1 // pred_region
      %100 = dma.done [#allocation9], 2048
    $region53: #{tpu_custom_call.1} parent=1 // pred_fallthru
      _
    // Predicated region
    $region54: #{tpu_custom_call.1} parent=1 // pred_check
      _
    $region55: #{tpu_custom_call.1} parent=1 // pred_check_branch
      %102 = sbr.rel (0) target = $region57
    $region56: #{tpu_custom_call.1} parent=1 // pred_region
      %103 = dma.done [#allocation9], 16384
    $region57: #{tpu_custom_call.1} parent=1 // pred_fallthru
      _
    %v104 = vld [vmem:[#allocation2] sm:$0xff]
    %v105 = vld [vmem:[#allocation2 + $0x8] sm:$0xff]
    %v106 = vld [vmem:[#allocation5] sm:$0xff]
    %v107 = vld [vmem:[#allocation5 + $0x8] sm:$0xff]
    %v108 = vld [vmem:[#allocation5 + $0x10] sm:$0xff]
    %v109 = vld [vmem:[#allocation5 + $0x18] sm:$0xff]
    %v110 = vld [vmem:[%s2] sm:$0x1]
    %v112 = vlaneseq
    %v113 = vshrl.u32 %v112, 7
    %v114 = vsub.s32 0, %v113
    %v115 = vrot.slane %v110, %v114
    %vm117 = vcmask 261120
    %v119 = vsel %vm117, %v104, 0
    %v122 = vsel %vm117, %v105, 0
    %124 = vmatprep.subr.mxu0 0.0
    %125 = vmatpush1.msra.mxu0 0.0
    %126 = vmatprep.subr.mxu0 0.0
    %127 = vmatpush1.msra.mxu0 0.0
    %128 = vmatprep.subr.mxu0 0.0
    %129 = vmatpush1.msra.mxu0 0.0
    %130 = vmatprep.subr.mxu0 0.0
    %131 = vmatpush1.msra.mxu0 0.0
    %132 = vmatprep.subr.mxu0 0.0
    %133 = vmatpush1.msra.mxu0 0.0
    %134 = vmatprep.subr.mxu0 0.0
    %135 = vmatpush1.msra.mxu0 0.0
    %136 = vmatprep.subr.mxu0 0.0
    %137 = vmatpush1.msra.mxu0 0.0
    %138 = vmatprep.subr.mxu0 0.0
    %139 = vmatpush1.msra.mxu0 0.0
    %140 = vmatprep.subr.mxu0 0.0
    %141 = vmatpush1.msra.mxu0 0.0
    %142 = vmatprep.subr.mxu0 0.0
    %143 = vmatpush1.msra.mxu0 0.0
    %144 = vmatprep.subr.mxu0 0.0
    %145 = vmatpush1.msra.mxu0 0.0
    %146 = vmatprep.subr.mxu0 0.0
    %147 = vmatpush1.msra.mxu0 0.0
    %148 = vmatprep.subr.mxu0 0.0
    %149 = vmatpush1.msra.mxu0 %v109
    %150 = vmatprep.subr.mxu0 0.0
    %151 = vmatpush1.msra.mxu0 %v108
    %152 = vmatprep.subr.mxu0 0.0
    %153 = vmatpush1.msra.mxu0 %v107
    %154 = vmatprep.subr.mxu0 0.0
    %155 = vmatpush1.msra.mxu0 %v106
    %156 = vmatprep.subr.mxu0 0.0
    %157 = vmatpush2.msra.mxu0 0.0
    %158 = vmatprep.subr.mxu0 0.0
    %159 = vmatpush2.msra.mxu0 0.0
    %160 = vmatprep.subr.mxu0 0.0
    %161 = vmatpush2.msra.mxu0 0.0
    %162 = vmatprep.subr.mxu0 0.0
    %163 = vmatpush2.msra.mxu0 0.0
    %164 = vmatprep.subr.mxu0 0.0
    %165 = vmatpush2.msra.mxu0 0.0
    %166 = vmatprep.subr.mxu0 0.0
    %167 = vmatpush2.msra.mxu0 0.0
    %168 = vmatprep.subr.mxu0 0.0
    %169 = vmatpush2.msra.mxu0 0.0
    %170 = vmatprep.subr.mxu0 0.0
    %171 = vmatpush2.msra.mxu0 0.0
    %172 = vmatprep.subr.mxu0 0.0
    %173 = vmatpush2.msra.mxu0 0.0
    %174 = vmatprep.subr.mxu0 0.0
    %175 = vmatpush2.msra.mxu0 0.0
    %176 = vmatprep.subr.mxu0 0.0
    %177 = vmatpush2.msra.mxu0 0.0
    %178 = vmatprep.subr.mxu0 0.0
    %179 = vmatpush2.msra.mxu0 0.0
    %180 = vmatprep.subr.mxu0 0.0
    %181 = vmatpush2.msra.mxu0 0.0
    %182 = vmatprep.subr.mxu0 0.0
    %183 = vmatpush2.msra.mxu0 0.0
    %184 = vmatprep.subr.mxu0 0.0
    %185 = vmatpush2.msra.mxu0 0.0
    %186 = vmatprep.subr.mxu0 0.0
    %187 = vmatpush2.msra.mxu0 0.0
    %188 = vmatprep.mubr.f32.mxu0 0.0
    %189 = vmatmul.mubr.f32.gmra.mxu0 %v119
    %v190 = vpop.f32.mrf.mxu0
    %v191 = vadd.f32 %v115, %v190
    %v192 = vpop.f32.mrf.mxu0
    %193 = vmatprep.mubr.f32.mxu0 0.0
    %194 = vmatmul.mubr.f32.gmra.mxu0 %v122
    %v195 = vpop.f32.mrf.mxu0
    %v196 = vadd.f32 %v115, %v195
    %v197 = vpop.f32.mrf.mxu0
    %198 = vdwg.mxu0
    %v199 = vmax.f32 %v191, 0.0
    %v200 = vmax.f32 %v196, 0.0
    %v201 = vld [vmem:[#allocation7] sm:$0xff]
    %v202 = vld [vmem:[#allocation7 + $0x8] sm:$0xff]
    %v203 = vld [vmem:[#allocation7 + $0x10] sm:$0xff]
    %v204 = vld [vmem:[#allocation7 + $0x18] sm:$0xff]
    %v205 = vld [vmem:[#allocation7 + $0x20] sm:$0xff]
    %v206 = vld [vmem:[#allocation7 + $0x28] sm:$0xff]
    %v207 = vld [vmem:[#allocation7 + $0x30] sm:$0xff]
    %v208 = vld [vmem:[#allocation7 + $0x38] sm:$0xff]
    %v209 = vld [vmem:[%s4] sm:$0x1]
    %v211 = vlaneseq
    %v212 = vshrl.u32 %v211, 7
    %v213 = vsub.s32 0, %v212
    %v214 = vrot.slane %v209, %v213
    %vm216 = vcmask 523264
    %v218 = vsel %vm216, %v199, 0
    %v221 = vsel %vm216, %v200, 0
    %223 = vmatprep.subr.mxu0 0.0
    %224 = vmatpush1.msra.mxu0 0.0
    %225 = vmatprep.subr.mxu0 0.0
    %226 = vmatpush1.msra.mxu0 0.0
    %227 = vmatprep.subr.mxu0 0.0
    %228 = vmatpush1.msra.mxu0 0.0
    %229 = vmatprep.subr.mxu0 0.0
    %230 = vmatpush1.msra.mxu0 0.0
    %231 = vmatprep.subr.mxu0 0.0
    %232 = vmatpush1.msra.mxu0 0.0
    %233 = vmatprep.subr.mxu0 0.0
    %234 = vmatpush1.msra.mxu0 0.0
    %235 = vmatprep.subr.mxu0 0.0
    %236 = vmatpush1.msra.mxu0 0.0
    %237 = vmatprep.subr.mxu0 0.0
    %238 = vmatpush1.msra.mxu0 0.0
    %239 = vmatprep.subr.mxu0 0.0
    %240 = vmatpush1.msra.mxu0 %v208
    %241 = vmatprep.subr.mxu0 0.0
    %242 = vmatpush1.msra.mxu0 %v207
    %243 = vmatprep.subr.mxu0 0.0
    %244 = vmatpush1.msra.mxu0 %v206
    %245 = vmatprep.subr.mxu0 0.0
    %246 = vmatpush1.msra.mxu0 %v205
    %247 = vmatprep.subr.mxu0 0.0
    %248 = vmatpush1.msra.mxu0 %v204
    %249 = vmatprep.subr.mxu0 0.0
    %250 = vmatpush1.msra.mxu0 %v203
    %251 = vmatprep.subr.mxu0 0.0
    %252 = vmatpush1.msra.mxu0 %v202
    %253 = vmatprep.subr.mxu0 0.0
    %254 = vmatpush1.msra.mxu0 %v201
    %255 = vmatprep.subr.mxu0 0.0
    %256 = vmatpush2.msra.mxu0 0.0
    %257 = vmatprep.subr.mxu0 0.0
    %258 = vmatpush2.msra.mxu0 0.0
    %259 = vmatprep.subr.mxu0 0.0
    %260 = vmatpush2.msra.mxu0 0.0
    %261 = vmatprep.subr.mxu0 0.0
    %262 = vmatpush2.msra.mxu0 0.0
    %263 = vmatprep.subr.mxu0 0.0
    %264 = vmatpush2.msra.mxu0 0.0
    %265 = vmatprep.subr.mxu0 0.0
    %266 = vmatpush2.msra.mxu0 0.0
    %267 = vmatprep.subr.mxu0 0.0
    %268 = vmatpush2.msra.mxu0 0.0
    %269 = vmatprep.subr.mxu0 0.0
    %270 = vmatpush2.msra.mxu0 0.0
    %271 = vmatprep.subr.mxu0 0.0
    %272 = vmatpush2.msra.mxu0 0.0
    %273 = vmatprep.subr.mxu0 0.0
    %274 = vmatpush2.msra.mxu0 0.0
    %275 = vmatprep.subr.mxu0 0.0
    %276 = vmatpush2.msra.mxu0 0.0
    %277 = vmatprep.subr.mxu0 0.0
    %278 = vmatpush2.msra.mxu0 0.0
    %279 = vmatprep.subr.mxu0 0.0
    %280 = vmatpush2.msra.mxu0 0.0
    %281 = vmatprep.subr.mxu0 0.0
    %282 = vmatpush2.msra.mxu0 0.0
    %283 = vmatprep.subr.mxu0 0.0
    %284 = vmatpush2.msra.mxu0 0.0
    %285 = vmatprep.subr.mxu0 0.0
    %286 = vmatpush2.msra.mxu0 0.0
    %287 = vmatprep.mubr.f32.mxu0 0.0
    %288 = vmatmul.mubr.f32.gmra.mxu0 %v218
    %v289 = vpop.f32.mrf.mxu0
    %v290 = vadd.f32 %v214, %v289
    %v291 = vpop.f32.mrf.mxu0
    %292 = vmatprep.mubr.f32.mxu0 0.0
    %293 = vmatmul.mubr.f32.gmra.mxu0 %v221
    %v294 = vpop.f32.mrf.mxu0
    %v295 = vadd.f32 %v214, %v294
    %v296 = vpop.f32.mrf.mxu0
    %297 = vdwg.mxu0
    %v298 = vmax.f32 %v290, 0.0
    %v299 = vmax.f32 %v295, 0.0
    %v300 = vld [vmem:[#allocation8] sm:$0xff]
    %v301 = vld [vmem:[#allocation8 + $0x8] sm:$0xff]
    %v302 = vld [vmem:[#allocation8 + $0x10] sm:$0xff]
    %v303 = vld [vmem:[#allocation8 + $0x18] sm:$0xff]
    %v304 = vld [vmem:[#allocation8 + $0x20] sm:$0xff]
    %v305 = vld [vmem:[#allocation8 + $0x28] sm:$0xff]
    %v306 = vld [vmem:[#allocation8 + $0x30] sm:$0xff]
    %v307 = vld [vmem:[#allocation8 + $0x38] sm:$0xff]
    %v308 = vld [vmem:[#allocation8 + $0x40] sm:$0xff]
    %v309 = vld [vmem:[#allocation8 + $0x48] sm:$0xff]
    %v310 = vld [vmem:[#allocation8 + $0x50] sm:$0xff]
    %v311 = vld [vmem:[#allocation8 + $0x58] sm:$0xff]
    %v312 = vld [vmem:[#allocation8 + $0x60] sm:$0xff]
    %v313 = vld [vmem:[#allocation8 + $0x68] sm:$0xff]
    %v314 = vld [vmem:[#allocation8 + $0x70] sm:$0xff]
    %v315 = vld [vmem:[#allocation8 + $0x78] sm:$0xff]
    %v316 = vld [vmem:[%s6] sm:$0x1]
    %v318 = vlaneseq
    %v319 = vshrl.u32 %v318, 7
    %v320 = vsub.s32 0, %v319
    %v321 = vrot.slane %v316, %v320
    %323 = vmatprep.subr.mxu0 0.0
    %324 = vmatpush1.msra.mxu0 %v315
    %325 = vmatprep.subr.mxu0 0.0
    %326 = vmatpush1.msra.mxu0 %v314
    %327 = vmatprep.subr.mxu0 0.0
    %328 = vmatpush1.msra.mxu0 %v313
    %329 = vmatprep.subr.mxu0 0.0
    %330 = vmatpush1.msra.mxu0 %v312
    %331 = vmatprep.subr.mxu0 0.0
    %332 = vmatpush1.msra.mxu0 %v311
    %333 = vmatprep.subr.mxu0 0.0
    %334 = vmatpush1.msra.mxu0 %v310
    %335 = vmatprep.subr.mxu0 0.0
    %336 = vmatpush1.msra.mxu0 %v309
    %337 = vmatprep.subr.mxu0 0.0
    %338 = vmatpush1.msra.mxu0 %v308
    %339 = vmatprep.subr.mxu0 0.0
    %340 = vmatpush1.msra.mxu0 %v307
    %341 = vmatprep.subr.mxu0 0.0
    %342 = vmatpush1.msra.mxu0 %v306
    %343 = vmatprep.subr.mxu0 0.0
    %344 = vmatpush1.msra.mxu0 %v305
    %345 = vmatprep.subr.mxu0 0.0
    %346 = vmatpush1.msra.mxu0 %v304
    %347 = vmatprep.subr.mxu0 0.0
    %348 = vmatpush1.msra.mxu0 %v303
    %349 = vmatprep.subr.mxu0 0.0
    %350 = vmatpush1.msra.mxu0 %v302
    %351 = vmatprep.subr.mxu0 0.0
    %352 = vmatpush1.msra.mxu0 %v301
    %353 = vmatprep.subr.mxu0 0.0
    %354 = vmatpush1.msra.mxu0 %v300
    %355 = vmatprep.subr.mxu0 0.0
    %356 = vmatpush2.msra.mxu0 0.0
    %357 = vmatprep.subr.mxu0 0.0
    %358 = vmatpush2.msra.mxu0 0.0
    %359 = vmatprep.subr.mxu0 0.0
    %360 = vmatpush2.msra.mxu0 0.0
    %361 = vmatprep.subr.mxu0 0.0
    %362 = vmatpush2.msra.mxu0 0.0
    %363 = vmatprep.subr.mxu0 0.0
    %364 = vmatpush2.msra.mxu0 0.0
    %365 = vmatprep.subr.mxu0 0.0
    %366 = vmatpush2.msra.mxu0 0.0
    %367 = vmatprep.subr.mxu0 0.0
    %368 = vmatpush2.msra.mxu0 0.0
    %369 = vmatprep.subr.mxu0 0.0
    %370 = vmatpush2.msra.mxu0 0.0
    %371 = vmatprep.subr.mxu0 0.0
    %372 = vmatpush2.msra.mxu0 0.0
    %373 = vmatprep.subr.mxu0 0.0
    %374 = vmatpush2.msra.mxu0 0.0
    %375 = vmatprep.subr.mxu0 0.0
    %376 = vmatpush2.msra.mxu0 0.0
    %377 = vmatprep.subr.mxu0 0.0
    %378 = vmatpush2.msra.mxu0 0.0
    %379 = vmatprep.subr.mxu0 0.0
    %380 = vmatpush2.msra.mxu0 0.0
    %381 = vmatprep.subr.mxu0 0.0
    %382 = vmatpush2.msra.mxu0 0.0
    %383 = vmatprep.subr.mxu0 0.0
    %384 = vmatpush2.msra.mxu0 0.0
    %385 = vmatprep.subr.mxu0 0.0
    %386 = vmatpush2.msra.mxu0 0.0
    %387 = vmatprep.mubr.f32.mxu0 0.0
    %388 = vmatmul.mubr.f32.gmra.mxu0 %v298
    %v389 = vpop.f32.mrf.mxu0
    %v390 = vadd.f32 %v321, %v389
    %v391 = vpop.f32.mrf.mxu0
    %392 = vmatprep.mubr.f32.mxu0 0.0
    %393 = vmatmul.mubr.f32.gmra.mxu0 %v299
    %v394 = vpop.f32.mrf.mxu0
    %v395 = vadd.f32 %v321, %v394
    %v396 = vpop.f32.mrf.mxu0
    %397 = vdwg.mxu0
    %398 = vst [vmem:[#allocation11] sm:$0xff] %v390
    %399 = vst [vmem:[#allocation11 + $0x8] sm:$0xff] %v395
    %v400 = vld [vmem:[#allocation10] sm:$0xff]
    %v401 = vld [vmem:[#allocation10 + $0x8] sm:$0xff]
    %v402 = vld [vmem:[#allocation10 + $0x10] sm:$0xff]
    %v403 = vld [vmem:[#allocation10 + $0x18] sm:$0xff]
    %v404 = vld [vmem:[#allocation10 + $0x20] sm:$0xff]
    %v405 = vld [vmem:[#allocation10 + $0x28] sm:$0xff]
    %v406 = vld [vmem:[#allocation10 + $0x30] sm:$0xff]
    %v407 = vld [vmem:[#allocation10 + $0x38] sm:$0xff]
    %v408 = vld [vmem:[#allocation10 + $0x40] sm:$0xff]
    %v409 = vld [vmem:[#allocation10 + $0x48] sm:$0xff]
    %v410 = vld [vmem:[#allocation10 + $0x50] sm:$0xff]
    %v411 = vld [vmem:[#allocation10 + $0x58] sm:$0xff]
    %v412 = vld [vmem:[#allocation10 + $0x60] sm:$0xff]
    %v413 = vld [vmem:[#allocation10 + $0x68] sm:$0xff]
    %v414 = vld [vmem:[#allocation10 + $0x70] sm:$0xff]
    %v415 = vld [vmem:[#allocation10 + $0x78] sm:$0xff]
    %v416 = vld [vmem:[#allocation10 + $0x80] sm:$0xff]
    %v417 = vld [vmem:[#allocation10 + $0x88] sm:$0xff]
    %v418 = vld [vmem:[#allocation10 + $0x90] sm:$0xff]
    %v419 = vld [vmem:[#allocation10 + $0x98] sm:$0xff]
    %v420 = vld [vmem:[#allocation10 + $0xa0] sm:$0xff]
    %v421 = vld [vmem:[#allocation10 + $0xa8] sm:$0xff]
    %v422 = vld [vmem:[#allocation10 + $0xb0] sm:$0xff]
    %v423 = vld [vmem:[#allocation10 + $0xb8] sm:$0xff]
    %v424 = vld [vmem:[#allocation10 + $0xc0] sm:$0xff]
    %v425 = vld [vmem:[#allocation10 + $0xc8] sm:$0xff]
    %v426 = vld [vmem:[#allocation10 + $0xd0] sm:$0xff]
    %v427 = vld [vmem:[#allocation10 + $0xd8] sm:$0xff]
    %v428 = vld [vmem:[#allocation10 + $0xe0] sm:$0xff]
    %v429 = vld [vmem:[#allocation10 + $0xe8] sm:$0xff]
    %v430 = vld [vmem:[#allocation10 + $0xf0] sm:$0xff]
    %v431 = vld [vmem:[#allocation10 + $0xf8] sm:$0xff]
    %v432 = vld [vmem:[#allocation10 + $0x100] sm:$0xff]
    %v433 = vld [vmem:[#allocation10 + $0x108] sm:$0xff]
    %v434 = vld [vmem:[#allocation10 + $0x110] sm:$0xff]
    %v435 = vld [vmem:[#allocation10 + $0x118] sm:$0xff]
    %v436 = vld [vmem:[#allocation10 + $0x120] sm:$0xff]
    %v437 = vld [vmem:[#allocation10 + $0x128] sm:$0xff]
    %v438 = vld [vmem:[#allocation10 + $0x130] sm:$0xff]
    %v439 = vld [vmem:[#allocation10 + $0x138] sm:$0xff]
    %v440 = vld [vmem:[#allocation10 + $0x140] sm:$0xff]
    %v441 = vld [vmem:[#allocation10 + $0x148] sm:$0xff]
    %v442 = vld [vmem:[#allocation10 + $0x150] sm:$0xff]
    %v443 = vld [vmem:[#allocation10 + $0x158] sm:$0xff]
    %v444 = vld [vmem:[#allocation10 + $0x160] sm:$0xff]
    %v445 = vld [vmem:[#allocation10 + $0x168] sm:$0xff]
    %v446 = vld [vmem:[#allocation10 + $0x170] sm:$0xff]
    %v447 = vld [vmem:[#allocation10 + $0x178] sm:$0xff]
    %v448 = vld [vmem:[#allocation10 + $0x180] sm:$0xff]
    %v449 = vld [vmem:[#allocation10 + $0x188] sm:$0xff]
    %v450 = vld [vmem:[#allocation10 + $0x190] sm:$0xff]
    %v451 = vld [vmem:[#allocation10 + $0x198] sm:$0xff]
    %v452 = vld [vmem:[#allocation10 + $0x1a0] sm:$0xff]
    %v453 = vld [vmem:[#allocation10 + $0x1a8] sm:$0xff]
    %v454 = vld [vmem:[#allocation10 + $0x1b0] sm:$0xff]
    %v455 = vld [vmem:[#allocation10 + $0x1b8] sm:$0xff]
    %v456 = vld [vmem:[#allocation10 + $0x1c0] sm:$0xff]
    %v457 = vld [vmem:[#allocation10 + $0x1c8] sm:$0xff]
    %v458 = vld [vmem:[#allocation10 + $0x1d0] sm:$0xff]
    %v459 = vld [vmem:[#allocation10 + $0x1d8] sm:$0xff]
    %v460 = vld [vmem:[#allocation10 + $0x1e0] sm:$0xff]
    %v461 = vld [vmem:[#allocation10 + $0x1e8] sm:$0xff]
    %v462 = vld [vmem:[#allocation10 + $0x1f0] sm:$0xff]
    %v463 = vld [vmem:[#allocation10 + $0x1f8] sm:$0xff]
    %v464 = vld [vmem:[#allocation10 + $0x200] sm:$0xff]
    %v465 = vld [vmem:[#allocation10 + $0x208] sm:$0xff]
    %v466 = vld [vmem:[#allocation10 + $0x210] sm:$0xff]
    %v467 = vld [vmem:[#allocation10 + $0x218] sm:$0xff]
    %v468 = vld [vmem:[#allocation10 + $0x220] sm:$0xff]
    %v469 = vld [vmem:[#allocation10 + $0x228] sm:$0xff]
    %v470 = vld [vmem:[#allocation10 + $0x230] sm:$0xff]
    %v471 = vld [vmem:[#allocation10 + $0x238] sm:$0xff]
    %v472 = vld [vmem:[#allocation10 + $0x240] sm:$0xff]
    %v473 = vld [vmem:[#allocation10 + $0x248] sm:$0xff]
    %v474 = vld [vmem:[#allocation10 + $0x250] sm:$0xff]
    %v475 = vld [vmem:[#allocation10 + $0x258] sm:$0xff]
    %v476 = vld [vmem:[#allocation10 + $0x260] sm:$0xff]
    %v477 = vld [vmem:[#allocation10 + $0x268] sm:$0xff]
    %v478 = vld [vmem:[#allocation10 + $0x270] sm:$0xff]
    %v479 = vld [vmem:[#allocation10 + $0x278] sm:$0xff]
    %v480 = vld [vmem:[#allocation10 + $0x280] sm:$0xff]
    %v481 = vld [vmem:[#allocation10 + $0x288] sm:$0xff]
    %v482 = vld [vmem:[#allocation10 + $0x290] sm:$0xff]
    %v483 = vld [vmem:[#allocation10 + $0x298] sm:$0xff]
    %v484 = vld [vmem:[#allocation10 + $0x2a0] sm:$0xff]
    %v485 = vld [vmem:[#allocation10 + $0x2a8] sm:$0xff]
    %v486 = vld [vmem:[#allocation10 + $0x2b0] sm:$0xff]
    %v487 = vld [vmem:[#allocation10 + $0x2b8] sm:$0xff]
    %v488 = vld [vmem:[#allocation10 + $0x2c0] sm:$0xff]
    %v489 = vld [vmem:[#allocation10 + $0x2c8] sm:$0xff]
    %v490 = vld [vmem:[#allocation10 + $0x2d0] sm:$0xff]
    %v491 = vld [vmem:[#allocation10 + $0x2d8] sm:$0xff]
    %v492 = vld [vmem:[#allocation10 + $0x2e0] sm:$0xff]
    %v493 = vld [vmem:[#allocation10 + $0x2e8] sm:$0xff]
    %v494 = vld [vmem:[#allocation10 + $0x2f0] sm:$0xff]
    %v495 = vld [vmem:[#allocation10 + $0x2f8] sm:$0xff]
    %v496 = vld [vmem:[#allocation10 + $0x300] sm:$0xff]
    %v497 = vld [vmem:[#allocation10 + $0x308] sm:$0xff]
    %v498 = vld [vmem:[#allocation10 + $0x310] sm:$0xff]
    %v499 = vld [vmem:[#allocation10 + $0x318] sm:$0xff]
    %v500 = vld [vmem:[#allocation10 + $0x320] sm:$0xff]
    %v501 = vld [vmem:[#allocation10 + $0x328] sm:$0xff]
    %v502 = vld [vmem:[#allocation10 + $0x330] sm:$0xff]
    %v503 = vld [vmem:[#allocation10 + $0x338] sm:$0xff]
    %v504 = vld [vmem:[#allocation10 + $0x340] sm:$0xff]
    %v505 = vld [vmem:[#allocation10 + $0x348] sm:$0xff]
    %v506 = vld [vmem:[#allocation10 + $0x350] sm:$0xff]
    %v507 = vld [vmem:[#allocation10 + $0x358] sm:$0xff]
    %v508 = vld [vmem:[#allocation10 + $0x360] sm:$0xff]
    %v509 = vld [vmem:[#allocation10 + $0x368] sm:$0xff]
    %v510 = vld [vmem:[#allocation10 + $0x370] sm:$0xff]
    %v511 = vld [vmem:[#allocation10 + $0x378] sm:$0xff]
    %v512 = vld [vmem:[#allocation10 + $0x380] sm:$0xff]
    %v513 = vld [vmem:[#allocation10 + $0x388] sm:$0xff]
    %v514 = vld [vmem:[#allocation10 + $0x390] sm:$0xff]
    %v515 = vld [vmem:[#allocation10 + $0x398] sm:$0xff]
    %v516 = vld [vmem:[#allocation10 + $0x3a0] sm:$0xff]
    %v517 = vld [vmem:[#allocation10 + $0x3a8] sm:$0xff]
    %v518 = vld [vmem:[#allocation10 + $0x3b0] sm:$0xff]
    %v519 = vld [vmem:[#allocation10 + $0x3b8] sm:$0xff]
    %v520 = vld [vmem:[#allocation10 + $0x3c0] sm:$0xff]
    %v521 = vld [vmem:[#allocation10 + $0x3c8] sm:$0xff]
    %v522 = vld [vmem:[#allocation10 + $0x3d0] sm:$0xff]
    %v523 = vld [vmem:[#allocation10 + $0x3d8] sm:$0xff]
    %v524 = vld [vmem:[#allocation10 + $0x3e0] sm:$0xff]
    %v525 = vld [vmem:[#allocation10 + $0x3e8] sm:$0xff]
    %v526 = vld [vmem:[#allocation10 + $0x3f0] sm:$0xff]
    %v527 = vld [vmem:[#allocation10 + $0x3f8] sm:$0xff]
    %v528 = vld [vmem:[%s8] sm:$0xff]
    %v530 = vlaneseq
    %v531 = vshrl.u32 %v530, 7
    %v532 = vsub.s32 0, %v531
    %v533 = vrot.slane %v528, %v532
    %v534 = vlaneseq
    %v535 = vshrl.u32 %v534, 7
    %v536 = vsub.s32 1, %v535
    %v537 = vrot.slane %v528, %v536
    %v538 = vlaneseq
    %v539 = vshrl.u32 %v538, 7
    %v540 = vsub.s32 2, %v539
    %v541 = vrot.slane %v528, %v540
    %v542 = vlaneseq
    %v543 = vshrl.u32 %v542, 7
    %v544 = vsub.s32 3, %v543
    %v545 = vrot.slane %v528, %v544
    %v546 = vlaneseq
    %v547 = vshrl.u32 %v546, 7
    %v548 = vsub.s32 4, %v547
    %v549 = vrot.slane %v528, %v548
    %v550 = vlaneseq
    %v551 = vshrl.u32 %v550, 7
    %v552 = vsub.s32 5, %v551
    %v553 = vrot.slane %v528, %v552
    %v554 = vlaneseq
    %v555 = vshrl.u32 %v554, 7
    %v556 = vsub.s32 6, %v555
    %v557 = vrot.slane %v528, %v556
    %v558 = vlaneseq
    %v559 = vshrl.u32 %v558, 7
    %v560 = vsub.s32 7, %v559
    %v561 = vrot.slane %v528, %v560
    %570 = vmatprep.subr.mxu0 %v521
    %571 = vmatpush1.msra.mxu0 %v520
    %572 = vmatprep.subr.mxu0 %v513
    %573 = vmatpush1.msra.mxu0 %v512
    %574 = vmatprep.subr.mxu0 %v505
    %575 = vmatpush1.msra.mxu0 %v504
    %576 = vmatprep.subr.mxu0 %v497
    %577 = vmatpush1.msra.mxu0 %v496
    %578 = vmatprep.subr.mxu0 %v489
    %579 = vmatpush1.msra.mxu0 %v488
    %580 = vmatprep.subr.mxu0 %v481
    %581 = vmatpush1.msra.mxu0 %v480
    %582 = vmatprep.subr.mxu0 %v473
    %583 = vmatpush1.msra.mxu0 %v472
    %584 = vmatprep.subr.mxu0 %v465
    %585 = vmatpush1.msra.mxu0 %v464
    %586 = vmatprep.subr.mxu0 %v457
    %587 = vmatpush1.msra.mxu0 %v456
    %588 = vmatprep.subr.mxu0 %v449
    %589 = vmatpush1.msra.mxu0 %v448
    %590 = vmatprep.subr.mxu0 %v441
    %591 = vmatpush1.msra.mxu0 %v440
    %592 = vmatprep.subr.mxu0 %v433
    %593 = vmatpush1.msra.mxu0 %v432
    %594 = vmatprep.subr.mxu0 %v425
    %595 = vmatpush1.msra.mxu0 %v424
    %596 = vmatprep.subr.mxu0 %v417
    %597 = vmatpush1.msra.mxu0 %v416
    %598 = vmatprep.subr.mxu0 %v409
    %599 = vmatpush1.msra.mxu0 %v408
    %600 = vmatprep.subr.mxu0 %v401
    %601 = vmatpush1.msra.mxu0 %v400
    %602 = vmatprep.subr.mxu0 0.0
    %603 = vmatpush2.msra.mxu0 0.0
    %604 = vmatprep.subr.mxu0 0.0
    %605 = vmatpush2.msra.mxu0 0.0
    %606 = vmatprep.subr.mxu0 0.0
    %607 = vmatpush2.msra.mxu0 0.0
    %608 = vmatprep.subr.mxu0 0.0
    %609 = vmatpush2.msra.mxu0 0.0
    %610 = vmatprep.subr.mxu0 0.0
    %611 = vmatpush2.msra.mxu0 0.0
    %612 = vmatprep.subr.mxu0 0.0
    %613 = vmatpush2.msra.mxu0 0.0
    %614 = vmatprep.subr.mxu0 0.0
    %615 = vmatpush2.msra.mxu0 0.0
    %616 = vmatprep.subr.mxu0 0.0
    %617 = vmatpush2.msra.mxu0 0.0
    %618 = vmatprep.subr.mxu0 0.0
    %619 = vmatpush2.msra.mxu0 0.0
    %620 = vmatprep.subr.mxu0 0.0
    %621 = vmatpush2.msra.mxu0 0.0
    %622 = vmatprep.subr.mxu0 0.0
    %623 = vmatpush2.msra.mxu0 0.0
    %624 = vmatprep.subr.mxu0 0.0
    %625 = vmatpush2.msra.mxu0 0.0
    %626 = vmatprep.subr.mxu0 0.0
    %627 = vmatpush2.msra.mxu0 0.0
    %628 = vmatprep.subr.mxu0 0.0
    %629 = vmatpush2.msra.mxu0 0.0
    %630 = vmatprep.subr.mxu0 0.0
    %631 = vmatpush2.msra.mxu0 0.0
    %632 = vmatprep.subr.mxu0 0.0
    %633 = vmatpush2.msra.mxu0 0.0
    %634 = vmatprep.mubr.f32.mxu0 0.0
    %635 = vmatmul.mubr.f32.gmra.mxu0 %v298
    %v636 = vpop.f32.mrf.mxu0
    %v637 = vadd.f32 %v533, %v636
    %v638 = vpop.f32.mrf.mxu0
    %v639 = vadd.f32 %v537, %v638
    %640 = vmatprep.mubr.f32.mxu0 0.0
    %641 = vmatmul.mubr.f32.gmra.mxu0 %v299
    %v642 = vpop.f32.mrf.mxu0
    %v643 = vadd.f32 %v533, %v642
    %v644 = vpop.f32.mrf.mxu0
    %v645 = vadd.f32 %v537, %v644
    %646 = vdwg.mxu0
    %647 = vmatprep.subr.mxu0 %v523
    %648 = vmatpush1.msra.mxu0 %v522
    %649 = vmatprep.subr.mxu0 %v515
    %650 = vmatpush1.msra.mxu0 %v514
    %651 = vmatprep.subr.mxu0 %v507
    %652 = vmatpush1.msra.mxu0 %v506
    %653 = vmatprep.subr.mxu0 %v499
    %654 = vmatpush1.msra.mxu0 %v498
    %655 = vmatprep.subr.mxu0 %v491
    %656 = vmatpush1.msra.mxu0 %v490
    %657 = vmatprep.subr.mxu0 %v483
    %658 = vmatpush1.msra.mxu0 %v482
    %659 = vmatprep.subr.mxu0 %v475
    %660 = vmatpush1.msra.mxu0 %v474
    %661 = vmatprep.subr.mxu0 %v467
    %662 = vmatpush1.msra.mxu0 %v466
    %663 = vmatprep.subr.mxu0 %v459
    %664 = vmatpush1.msra.mxu0 %v458
    %665 = vmatprep.subr.mxu0 %v451
    %666 = vmatpush1.msra.mxu0 %v450
    %667 = vmatprep.subr.mxu0 %v443
    %668 = vmatpush1.msra.mxu0 %v442
    %669 = vmatprep.subr.mxu0 %v435
    %670 = vmatpush1.msra.mxu0 %v434
    %671 = vmatprep.subr.mxu0 %v427
    %672 = vmatpush1.msra.mxu0 %v426
    %673 = vmatprep.subr.mxu0 %v419
    %674 = vmatpush1.msra.mxu0 %v418
    %675 = vmatprep.subr.mxu0 %v411
    %676 = vmatpush1.msra.mxu0 %v410
    %677 = vmatprep.subr.mxu0 %v403
    %678 = vmatpush1.msra.mxu0 %v402
    %679 = vmatprep.subr.mxu0 0.0
    %680 = vmatpush2.msra.mxu0 0.0
    %681 = vmatprep.subr.mxu0 0.0
    %682 = vmatpush2.msra.mxu0 0.0
    %683 = vmatprep.subr.mxu0 0.0
    %684 = vmatpush2.msra.mxu0 0.0
    %685 = vmatprep.subr.mxu0 0.0
    %686 = vmatpush2.msra.mxu0 0.0
    %687 = vmatprep.subr.mxu0 0.0
    %688 = vmatpush2.msra.mxu0 0.0
    %689 = vmatprep.subr.mxu0 0.0
    %690 = vmatpush2.msra.mxu0 0.0
    %691 = vmatprep.subr.mxu0 0.0
    %692 = vmatpush2.msra.mxu0 0.0
    %693 = vmatprep.subr.mxu0 0.0
    %694 = vmatpush2.msra.mxu0 0.0
    %695 = vmatprep.subr.mxu0 0.0
    %696 = vmatpush2.msra.mxu0 0.0
    %697 = vmatprep.subr.mxu0 0.0
    %698 = vmatpush2.msra.mxu0 0.0
    %699 = vmatprep.subr.mxu0 0.0
    %700 = vmatpush2.msra.mxu0 0.0
    %701 = vmatprep.subr.mxu0 0.0
    %702 = vmatpush2.msra.mxu0 0.0
    %703 = vmatprep.subr.mxu0 0.0
    %704 = vmatpush2.msra.mxu0 0.0
    %705 = vmatprep.subr.mxu0 0.0
    %706 = vmatpush2.msra.mxu0 0.0
    %707 = vmatprep.subr.mxu0 0.0
    %708 = vmatpush2.msra.mxu0 0.0
    %709 = vmatprep.subr.mxu0 0.0
    %710 = vmatpush2.msra.mxu0 0.0
    %711 = vmatprep.mubr.f32.mxu0 0.0
    %712 = vmatmul.mubr.f32.gmra.mxu0 %v298
    %v713 = vpop.f32.mrf.mxu0
    %v714 = vadd.f32 %v541, %v713
    %v715 = vpop.f32.mrf.mxu0
    %v716 = vadd.f32 %v545, %v715
    %717 = vmatprep.mubr.f32.mxu0 0.0
    %718 = vmatmul.mubr.f32.gmra.mxu0 %v299
    %v719 = vpop.f32.mrf.mxu0
    %v720 = vadd.f32 %v541, %v719
    %v721 = vpop.f32.mrf.mxu0
    %v722 = vadd.f32 %v545, %v721
    %723 = vdwg.mxu0
    %724 = vmatprep.subr.mxu0 %v525
    %725 = vmatpush1.msra.mxu0 %v524
    %726 = vmatprep.subr.mxu0 %v517
    %727 = vmatpush1.msra.mxu0 %v516
    %728 = vmatprep.subr.mxu0 %v509
    %729 = vmatpush1.msra.mxu0 %v508
    %730 = vmatprep.subr.mxu0 %v501
    %731 = vmatpush1.msra.mxu0 %v500
    %732 = vmatprep.subr.mxu0 %v493
    %733 = vmatpush1.msra.mxu0 %v492
    %734 = vmatprep.subr.mxu0 %v485
    %735 = vmatpush1.msra.mxu0 %v484
    %736 = vmatprep.subr.mxu0 %v477
    %737 = vmatpush1.msra.mxu0 %v476
    %738 = vmatprep.subr.mxu0 %v469
    %739 = vmatpush1.msra.mxu0 %v468
    %740 = vmatprep.subr.mxu0 %v461
    %741 = vmatpush1.msra.mxu0 %v460
    %742 = vmatprep.subr.mxu0 %v453
    %743 = vmatpush1.msra.mxu0 %v452
    %744 = vmatprep.subr.mxu0 %v445
    %745 = vmatpush1.msra.mxu0 %v444
    %746 = vmatprep.subr.mxu0 %v437
    %747 = vmatpush1.msra.mxu0 %v436
    %748 = vmatprep.subr.mxu0 %v429
    %749 = vmatpush1.msra.mxu0 %v428
    %750 = vmatprep.subr.mxu0 %v421
    %751 = vmatpush1.msra.mxu0 %v420
    %752 = vmatprep.subr.mxu0 %v413
    %753 = vmatpush1.msra.mxu0 %v412
    %754 = vmatprep.subr.mxu0 %v405
    %755 = vmatpush1.msra.mxu0 %v404
    %756 = vmatprep.subr.mxu0 0.0
    %757 = vmatpush2.msra.mxu0 0.0
    %758 = vmatprep.subr.mxu0 0.0
    %759 = vmatpush2.msra.mxu0 0.0
    %760 = vmatprep.subr.mxu0 0.0
    %761 = vmatpush2.msra.mxu0 0.0
    %762 = vmatprep.subr.mxu0 0.0
    %763 = vmatpush2.msra.mxu0 0.0
    %764 = vmatprep.subr.mxu0 0.0
    %765 = vmatpush2.msra.mxu0 0.0
    %766 = vmatprep.subr.mxu0 0.0
    %767 = vmatpush2.msra.mxu0 0.0
    %768 = vmatprep.subr.mxu0 0.0
    %769 = vmatpush2.msra.mxu0 0.0
    %770 = vmatprep.subr.mxu0 0.0
    %771 = vmatpush2.msra.mxu0 0.0
    %772 = vmatprep.subr.mxu0 0.0
    %773 = vmatpush2.msra.mxu0 0.0
    %774 = vmatprep.subr.mxu0 0.0
    %775 = vmatpush2.msra.mxu0 0.0
    %776 = vmatprep.subr.mxu0 0.0
    %777 = vmatpush2.msra.mxu0 0.0
    %778 = vmatprep.subr.mxu0 0.0
    %779 = vmatpush2.msra.mxu0 0.0
    %780 = vmatprep.subr.mxu0 0.0
    %781 = vmatpush2.msra.mxu0 0.0
    %782 = vmatprep.subr.mxu0 0.0
    %783 = vmatpush2.msra.mxu0 0.0
    %784 = vmatprep.subr.mxu0 0.0
    %785 = vmatpush2.msra.mxu0 0.0
    %786 = vmatprep.subr.mxu0 0.0
    %787 = vmatpush2.msra.mxu0 0.0
    %788 = vmatprep.mubr.f32.mxu0 0.0
    %789 = vmatmul.mubr.f32.gmra.mxu0 %v298
    %v790 = vpop.f32.mrf.mxu0
    %v791 = vadd.f32 %v549, %v790
    %v792 = vpop.f32.mrf.mxu0
    %v793 = vadd.f32 %v553, %v792
    %794 = vmatprep.mubr.f32.mxu0 0.0
    %795 = vmatmul.mubr.f32.gmra.mxu0 %v299
    %v796 = vpop.f32.mrf.mxu0
    %v797 = vadd.f32 %v549, %v796
    %v798 = vpop.f32.mrf.mxu0
    %v799 = vadd.f32 %v553, %v798
    %800 = vdwg.mxu0
    %801 = vmatprep.subr.mxu0 %v527
    %802 = vmatpush1.msra.mxu0 %v526
    %803 = vmatprep.subr.mxu0 %v519
    %804 = vmatpush1.msra.mxu0 %v518
    %805 = vmatprep.subr.mxu0 %v511
    %806 = vmatpush1.msra.mxu0 %v510
    %807 = vmatprep.subr.mxu0 %v503
    %808 = vmatpush1.msra.mxu0 %v502
    %809 = vmatprep.subr.mxu0 %v495
    %810 = vmatpush1.msra.mxu0 %v494
    %811 = vmatprep.subr.mxu0 %v487
    %812 = vmatpush1.msra.mxu0 %v486
    %813 = vmatprep.subr.mxu0 %v479
    %814 = vmatpush1.msra.mxu0 %v478
    %815 = vmatprep.subr.mxu0 %v471
    %816 = vmatpush1.msra.mxu0 %v470
    %817 = vmatprep.subr.mxu0 %v463
    %818 = vmatpush1.msra.mxu0 %v462
    %819 = vmatprep.subr.mxu0 %v455
    %820 = vmatpush1.msra.mxu0 %v454
    %821 = vmatprep.subr.mxu0 %v447
    %822 = vmatpush1.msra.mxu0 %v446
    %823 = vmatprep.subr.mxu0 %v439
    %824 = vmatpush1.msra.mxu0 %v438
    %825 = vmatprep.subr.mxu0 %v431
    %826 = vmatpush1.msra.mxu0 %v430
    %827 = vmatprep.subr.mxu0 %v423
    %828 = vmatpush1.msra.mxu0 %v422
    %829 = vmatprep.subr.mxu0 %v415
    %830 = vmatpush1.msra.mxu0 %v414
    %831 = vmatprep.subr.mxu0 %v407
    %832 = vmatpush1.msra.mxu0 %v406
    %833 = vmatprep.subr.mxu0 0.0
    %834 = vmatpush2.msra.mxu0 0.0
    %835 = vmatprep.subr.mxu0 0.0
    %836 = vmatpush2.msra.mxu0 0.0
    %837 = vmatprep.subr.mxu0 0.0
    %838 = vmatpush2.msra.mxu0 0.0
    %839 = vmatprep.subr.mxu0 0.0
    %840 = vmatpush2.msra.mxu0 0.0
    %841 = vmatprep.subr.mxu0 0.0
    %842 = vmatpush2.msra.mxu0 0.0
    %843 = vmatprep.subr.mxu0 0.0
    %844 = vmatpush2.msra.mxu0 0.0
    %845 = vmatprep.subr.mxu0 0.0
    %846 = vmatpush2.msra.mxu0 0.0
    %847 = vmatprep.subr.mxu0 0.0
    %848 = vmatpush2.msra.mxu0 0.0
    %849 = vmatprep.subr.mxu0 0.0
    %850 = vmatpush2.msra.mxu0 0.0
    %851 = vmatprep.subr.mxu0 0.0
    %852 = vmatpush2.msra.mxu0 0.0
    %853 = vmatprep.subr.mxu0 0.0
    %854 = vmatpush2.msra.mxu0 0.0
    %855 = vmatprep.subr.mxu0 0.0
    %856 = vmatpush2.msra.mxu0 0.0
    %857 = vmatprep.subr.mxu0 0.0
    %858 = vmatpush2.msra.mxu0 0.0
    %859 = vmatprep.subr.mxu0 0.0
    %860 = vmatpush2.msra.mxu0 0.0
    %861 = vmatprep.subr.mxu0 0.0
    %862 = vmatpush2.msra.mxu0 0.0
    %863 = vmatprep.subr.mxu0 0.0
    %864 = vmatpush2.msra.mxu0 0.0
    %865 = vmatprep.mubr.f32.mxu0 0.0
    %866 = vmatmul.mubr.f32.gmra.mxu0 %v298
    %v867 = vpop.f32.mrf.mxu0
    %v868 = vadd.f32 %v557, %v867
    %v869 = vpop.f32.mrf.mxu0
    %v870 = vadd.f32 %v561, %v869
    %871 = vmatprep.mubr.f32.mxu0 0.0
    %872 = vmatmul.mubr.f32.gmra.mxu0 %v299
    %v873 = vpop.f32.mrf.mxu0
    %v874 = vadd.f32 %v557, %v873
    %v875 = vpop.f32.mrf.mxu0
    %v876 = vadd.f32 %v561, %v875
    %877 = vdwg.mxu0
    %878 = vst [vmem:[#allocation12] sm:$0xff] %v637
    %879 = vst [vmem:[#allocation12 + $0x8] sm:$0xff] %v639
    %880 = vst [vmem:[#allocation12 + $0x10] sm:$0xff] %v714
    %881 = vst [vmem:[#allocation12 + $0x18] sm:$0xff] %v716
    %882 = vst [vmem:[#allocation12 + $0x20] sm:$0xff] %v791
    %883 = vst [vmem:[#allocation12 + $0x28] sm:$0xff] %v793
    %884 = vst [vmem:[#allocation12 + $0x30] sm:$0xff] %v868
    %885 = vst [vmem:[#allocation12 + $0x38] sm:$0xff] %v870
    %886 = vst [vmem:[#allocation12 + $0x40] sm:$0xff] %v643
    %887 = vst [vmem:[#allocation12 + $0x48] sm:$0xff] %v645
    %888 = vst [vmem:[#allocation12 + $0x50] sm:$0xff] %v720
    %889 = vst [vmem:[#allocation12 + $0x58] sm:$0xff] %v722
    %890 = vst [vmem:[#allocation12 + $0x60] sm:$0xff] %v797
    %891 = vst [vmem:[#allocation12 + $0x68] sm:$0xff] %v799
    %892 = vst [vmem:[#allocation12 + $0x70] sm:$0xff] %v874
    %893 = vst [vmem:[#allocation12 + $0x78] sm:$0xff] %v876
    // Predicated region
    $region58: #{tpu_custom_call.1} parent=1 // pred_check
      _
    $region59: #{tpu_custom_call.1} parent=1 // pred_check_branch
      %895 = sbr.rel (0) target = $region61
    $region60: #{tpu_custom_call.1} parent=1 // pred_region
      %s897 = ssub.s32 256, 256
      %898 = vsyncadd [#allocation4], %s897
      %s899 = sshll.u32 [#allocation11], 4
      %s900 = int_to_ptr.vmem [resolvable:$true] %s899
      %905 = dma.vmem_to_hbm [thread:$0]  %s900, 256, %s9, [#allocation4], 128, 128, 8
    $region61: #{tpu_custom_call.1} parent=1 // pred_fallthru
      _
    // Predicated region
    $region62: #{tpu_custom_call.1} parent=1 // pred_check
      _
    $region63: #{tpu_custom_call.1} parent=1 // pred_check_branch
      %907 = sbr.rel (0) target = $region65
    $region64: #{tpu_custom_call.1} parent=1 // pred_region
      %s909 = ssub.s32 2048, 2048
      %910 = vsyncadd [#allocation13], %s909
      %s911 = sshll.u32 [#allocation12], 4
      %s912 = int_to_ptr.vmem [resolvable:$true] %s911
      %917 = dma.vmem_to_hbm [thread:$0]  %s912, 2048, %s10, [#allocation13], 1024, 1024, 64
    $region65: #{tpu_custom_call.1} parent=1 // pred_fallthru
      _
    // Predicated region
    $region66: #{tpu_custom_call.1} parent=1 // pred_check
      _
    $region67: #{tpu_custom_call.1} parent=1 // pred_check_branch
      %919 = sbr.rel (0) target = $region69
    $region68: #{tpu_custom_call.1} parent=1 // pred_region
      %920 = dma.done [#allocation4], 256
    $region69: #{tpu_custom_call.1} parent=1 // pred_fallthru
      _
    // Predicated region
    $region70: #{tpu_custom_call.1} parent=1 // pred_check
      _
    $region71: #{tpu_custom_call.1} parent=1 // pred_check_branch
      %922 = sbr.rel (0) target = $region73
    $region72: #{tpu_custom_call.1} parent=1 // pred_region
      %923 = dma.done [#allocation13], 2048
    $region73: #{tpu_custom_call.1} parent=1 // pred_fallthru
      _
    %924 = vsyncpa [#allocation3], 1
    %925 = vsyncpa [#allocation6], 1
    %926 = vsyncpa [#allocation9], 1
    %927 = vsyncpa [#allocation4], 1
    %928 = vsyncpa [#allocation13], 1

</llo_original>
